<compile_context>
chip_gen: v6e
topology: v6e:2x2x1
jax: 0.10.0
libtpu: 0.0.40
codegen_flags: <defaults>
</compile_context>

<pallas_src>
import functools

import jax
import jax.numpy as jnp
from jax.experimental import pallas as pl
from jax.experimental.pallas import tpu as pltpu

EPS = 1e-5


def _layer_norm(a, w, b):
    # f32 statistics (inputs are f32 here).
    mean = jnp.mean(a, axis=-1, keepdims=True)
    var = jnp.mean((a - mean) ** 2, axis=-1, keepdims=True)
    return (a - mean) * jax.lax.rsqrt(var + EPS) * w + b


def transformer_block_kernel(
    x_ref,
    wq_ref, wk_ref, wv_ref, wu_ref, bu_ref,
    ln1w_ref, ln1b_ref, w1_ref, b1_ref, w2_ref, b2_ref,
    ln2w_ref, ln2b_ref,
    o_ref,
    q_s, k_s, v_s, attn_s,
    *, heads, emb, bb, seq):
    H, E, T = heads, emb, seq
    M = bb * T
    inv_sqrt_e = 1.0 / (E ** 0.5)   # == (1/E**0.25) applied to both q and k, folded

    # Flatten the batch block so the MXU sees M = bb*T rows (sublane-only reshape).
    x = x_ref[...].reshape(M, E)               # f32
    x_bf = x.astype(jnp.bfloat16)

    # ---- fused full-width projections: one lane-dense matmul per tensor -----
    q_s[...] = jnp.dot(x_bf, wq_ref[...], preferred_element_type=jnp.float32)
    k_s[...] = jnp.dot(x_bf, wk_ref[...], preferred_element_type=jnp.float32)
    v_s[...] = jnp.dot(x_bf, wv_ref[...], preferred_element_type=jnp.float32)

    # ---- per-head attention (heads small & static) ---------------------------
    # Softmax statistics in f32; matmul operands cast to bf16 (f32 accumulation).
    # Head outputs are written into a lane-dense (M, H*E) VMEM scratch so the
    # unify matmul below stays a single MXU-friendly matmul (no concatenate).
    for h in range(H):
        lo, hi = h * E, (h + 1) * E
        q = q_s[:, lo:hi].reshape(bb, T, E).astype(jnp.bfloat16)
        k = k_s[:, lo:hi].reshape(bb, T, E).astype(jnp.bfloat16)
        v = v_s[:, lo:hi].reshape(bb, T, E).astype(jnp.bfloat16)

        # NT matmul (contract last dims), batched over the bb batch elements.
        s = jax.lax.dot_general(
            q, k, (((2,), (2,)), ((0,), (0,))),
            preferred_element_type=jnp.float32) * inv_sqrt_e          # (bb, T, T)
        s = s - jnp.max(s, axis=-1, keepdims=True)
        p = jnp.exp(s)
        p = p * pl.reciprocal(jnp.sum(p, axis=-1, keepdims=True), approx=False)

        o_h = jax.lax.dot_general(
            p.astype(jnp.bfloat16), v, (((2,), (1,)), ((0,), (0,))),
            preferred_element_type=jnp.float32)                       # (bb, T, E)
        attn_s[:, lo:hi] = o_h.reshape(M, E)

    # ---- unify heads: single (M, H*E) x (H*E, E) matmul ----------------------
    attended = jnp.dot(attn_s[...].astype(jnp.bfloat16), wu_ref[...],
                       preferred_element_type=jnp.float32) + bu_ref[...]

    # ---- residual + LayerNorm 1 ----------------------------------------------
    a = _layer_norm(attended + x, ln1w_ref[...], ln1b_ref[...])

    # ---- feed-forward: Linear -> ReLU -> Linear ------------------------------
    hdn = jnp.maximum(
        jnp.dot(a.astype(jnp.bfloat16), w1_ref[...],
                preferred_element_type=jnp.float32) + b1_ref[...], 0.0)
    ff = jnp.dot(hdn.astype(jnp.bfloat16), w2_ref[...],
                 preferred_element_type=jnp.float32) + b2_ref[...]

    # ---- residual + LayerNorm 2 ----------------------------------------------
    o_ref[...] = _layer_norm(ff + a, ln2w_ref[...], ln2b_ref[...]).reshape(bb, T, E)


def transformer_block(x, params, *, heads):
    B, T, E = x.shape
    H = heads

    # Pack as many batch elements as possible into one grid step so the row (M)
    # dimension of the projection / unify / FFN matmuls approaches the native
    # MXU tile (128+).  At the tiny test shape this means the whole batch.
    bb = min(B, max(1, 128 // T)) if T < 128 else 1
    while B % bb:
        bb -= 1
    M = bb * T
    n_steps = B // bb

    def inv(shape):
        # grid-invariant full-array block (weights / biases stay resident)
        return pl.BlockSpec(shape, lambda i: (0,) * len(shape))

    in_specs = [
        pl.BlockSpec((bb, T, E), lambda i: (i, 0, 0)),       # x
        inv((E, E * H)), inv((E, E * H)), inv((E, E * H)),   # Wq, Wk, Wv (bf16)
        inv((E * H, E)), inv((1, E)),                        # W_unify (bf16), b_unify
        inv((1, E)), inv((1, E)),                            # ln1 w, b
        inv((E, 4 * E)), inv((1, 4 * E)),                    # fc1 w (bf16), b
        inv((4 * E, E)), inv((1, E)),                        # fc2 w (bf16), b
        inv((1, E)), inv((1, E)),                            # ln2 w, b
    ]

    kernel = functools.partial(transformer_block_kernel,
                               heads=H, emb=E, bb=bb, seq=T)

    return pl.pallas_call(
        kernel,
        out_shape=jax.ShapeDtypeStruct((B, T, E), jnp.float32),
        grid_spec=pltpu.PrefetchScalarGridSpec(
            num_scalar_prefetch=0,
            grid=(n_steps,),
            in_specs=in_specs,
            out_specs=pl.BlockSpec((bb, T, E), lambda i: (i, 0, 0)),
            scratch_shapes=[
                pltpu.VMEM((M, H * E), jnp.float32),   # q (all heads, lane-dense)
                pltpu.VMEM((M, H * E), jnp.float32),   # k
                pltpu.VMEM((M, H * E), jnp.float32),   # v
                pltpu.VMEM((M, H * E), jnp.float32),   # merged head outputs
            ]),
        compiler_params=pltpu.CompilerParams(
            dimension_semantics=("parallel",),
            vmem_limit_bytes=64 * 1024 * 1024),
    )(x, *params)


def init_params(key, emb, heads, fc_mult=4):
    """Deterministic synthetic params.  Linear weights are stored transposed to
    (in_features, out_features) and in bfloat16 (MXU operands); biases and
    LayerNorm affine params stay float32."""
    ks = jax.random.split(key, 6)
    std = 0.02
    bf = jnp.bfloat16
    wq = (jax.random.normal(ks[0], (emb, emb * heads), jnp.float32) * std).astype(bf)
    wk = (jax.random.normal(ks[1], (emb, emb * heads), jnp.float32) * std).astype(bf)
    wv = (jax.random.normal(ks[2], (emb, emb * heads), jnp.float32) * std).astype(bf)
    wu = (jax.random.normal(ks[3], (emb * heads, emb), jnp.float32) * std).astype(bf)
    bu = jnp.zeros((1, emb), jnp.float32)
    ln1w = jnp.ones((1, emb), jnp.float32)
    ln1b = jnp.zeros((1, emb), jnp.float32)
    w1 = (jax.random.normal(ks[4], (emb, emb * fc_mult), jnp.float32) * std).astype(bf)
    b1 = jnp.zeros((1, emb * fc_mult), jnp.float32)
    w2 = (jax.random.normal(ks[5], (emb * fc_mult, emb), jnp.float32) * std).astype(bf)
    b2 = jnp.zeros((1, emb), jnp.float32)
    ln2w = jnp.ones((1, emb), jnp.float32)
    ln2b = jnp.zeros((1, emb), jnp.float32)
    return (wq, wk, wv, wu, bu, ln1w, ln1b, w1, b1, w2, b2, ln2w, ln2b)


def reference(x, params, heads):
    """Pure-JAX reference mirroring the PyTorch forward (eval mode) with the
    same bf16-operand / f32-accumulation numerics as the kernel.  The single
    1/sqrt(E) score scale is mathematically identical to PyTorch's division of
    q and k by E**0.25."""
    (wq, wk, wv, wu, bu, ln1w, ln1b, w1, b1, w2, b2, ln2w, ln2b) = params
    B, T, E = x.shape
    H = heads
    bf = jnp.bfloat16

    def mm(a, w):
        return jnp.dot(a.astype(bf), w.astype(bf), preferred_element_type=jnp.float32)

    x2 = x.reshape(B * T, E)

    def proj(w):
        return mm(x2, w).reshape(B, T, H, E).transpose(0, 2, 1, 3)  # (B, H, T, E)

    q, k, v = proj(wq), proj(wk), proj(wv)
    s = jnp.einsum('bhqe,bhke->bhqk', q.astype(bf), k.astype(bf),
                   preferred_element_type=jnp.float32) * (1.0 / (E ** 0.5))
    s = s - jnp.max(s, axis=-1, keepdims=True)
    p = jnp.exp(s)
    p = p * (1.0 / jnp.sum(p, axis=-1, keepdims=True))
    out = jnp.einsum('bhqk,bhke->bhqe', p.astype(bf), v.astype(bf),
                     preferred_element_type=jnp.float32)
    out = out.transpose(0, 2, 1, 3).reshape(B * T, H * E)
    attended = mm(out, wu) + bu[0]

    def ln(a, w, b):
        m = a.mean(-1, keepdims=True)
        var = ((a - m) ** 2).mean(-1, keepdims=True)
        return (a - m) * jax.lax.rsqrt(var + EPS) * w[0] + b[0]

    a = ln(attended + x2, ln1w, ln1b)
    hdn = jnp.maximum(mm(a, w1) + b1[0], 0.0)
    ff = mm(hdn, w2) + b2[0]
    return ln(ff + a, ln2w, ln2b).reshape(B, T, E)


if __name__ == "__main__":
    B, T, E, H = 2, 8, 32, 4
    key = jax.random.PRNGKey(0)
    kx, kp = jax.random.split(key)
    x = jax.random.normal(kx, (B, T, E), jnp.float32)
    params = init_params(kp, E, H)

    y = jax.block_until_ready(transformer_block(x, params, heads=H))
    y_ref = jax.block_until_ready(reference(x, params, H))

    assert y.shape == (B, T, E)
    max_diff = float(jnp.max(jnp.abs(y - y_ref)))
    assert jnp.allclose(y, y_ref, atol=2e-3, rtol=2e-3), (
        f"mismatch vs reference, max abs diff {max_diff}")

    print("KERNEL_OK")
</pallas_src>

<mosaic_0001>
module attributes {stable_mosaic.version = 11 : i64} {
  func.func @transformer_block_kernel(%arg0: i32, %arg1: memref<2x8x32xf32, #tpu.memory_space<vmem>>, %arg2: memref<32x128xbf16, #tpu.memory_space<vmem>>, %arg3: memref<32x128xbf16, #tpu.memory_space<vmem>>, %arg4: memref<32x128xbf16, #tpu.memory_space<vmem>>, %arg5: memref<128x32xbf16, #tpu.memory_space<vmem>>, %arg6: memref<1x32xf32, #tpu.memory_space<vmem>>, %arg7: memref<1x32xf32, #tpu.memory_space<vmem>>, %arg8: memref<1x32xf32, #tpu.memory_space<vmem>>, %arg9: memref<32x128xbf16, #tpu.memory_space<vmem>>, %arg10: memref<1x128xf32, #tpu.memory_space<vmem>>, %arg11: memref<128x32xbf16, #tpu.memory_space<vmem>>, %arg12: memref<1x32xf32, #tpu.memory_space<vmem>>, %arg13: memref<1x32xf32, #tpu.memory_space<vmem>>, %arg14: memref<1x32xf32, #tpu.memory_space<vmem>>, %arg15: memref<2x8x32xf32, #tpu.memory_space<vmem>>, %arg16: memref<16x128xf32, #tpu.memory_space<vmem>>, %arg17: memref<16x128xf32, #tpu.memory_space<vmem>>, %arg18: memref<16x128xf32, #tpu.memory_space<vmem>>, %arg19: memref<16x128xf32, #tpu.memory_space<vmem>>) attributes {dimension_semantics = [#tpu.dimension_semantics<parallel>], iteration_bounds = array<i64: 1>, scalar_prefetch = 0 : i64, scratch_operands = 4 : i64, tpu.core_type = #tpu.core_type<tc>, window_params = [{transform_indices = @transform_0, window_bounds = array<i64: 2, 8, 32>}, {pipeline_mode = #tpu.pipeline_mode<synchronous>, transform_indices = @transform_1, window_bounds = array<i64: 32, 128>}, {pipeline_mode = #tpu.pipeline_mode<synchronous>, transform_indices = @transform_2, window_bounds = array<i64: 32, 128>}, {pipeline_mode = #tpu.pipeline_mode<synchronous>, transform_indices = @transform_3, window_bounds = array<i64: 32, 128>}, {pipeline_mode = #tpu.pipeline_mode<synchronous>, transform_indices = @transform_4, window_bounds = array<i64: 128, 32>}, {pipeline_mode = #tpu.pipeline_mode<synchronous>, transform_indices = @transform_5, window_bounds = array<i64: 1, 32>}, {pipeline_mode = #tpu.pipeline_mode<synchronous>, transform_indices = @transform_6, window_bounds = array<i64: 1, 32>}, {pipeline_mode = #tpu.pipeline_mode<synchronous>, transform_indices = @transform_7, window_bounds = array<i64: 1, 32>}, {pipeline_mode = #tpu.pipeline_mode<synchronous>, transform_indices = @transform_8, window_bounds = array<i64: 32, 128>}, {pipeline_mode = #tpu.pipeline_mode<synchronous>, transform_indices = @transform_9, window_bounds = array<i64: 1, 128>}, {pipeline_mode = #tpu.pipeline_mode<synchronous>, transform_indices = @transform_10, window_bounds = array<i64: 128, 32>}, {pipeline_mode = #tpu.pipeline_mode<synchronous>, transform_indices = @transform_11, window_bounds = array<i64: 1, 32>}, {pipeline_mode = #tpu.pipeline_mode<synchronous>, transform_indices = @transform_12, window_bounds = array<i64: 1, 32>}, {pipeline_mode = #tpu.pipeline_mode<synchronous>, transform_indices = @transform_13, window_bounds = array<i64: 1, 32>}, {transform_indices = @transform_14, window_bounds = array<i64: 2, 8, 32>}]} {
    %c0 = arith.constant 0 : index
    %c0_0 = arith.constant 0 : index
    %c0_1 = arith.constant 0 : index
    %0 = vector.load %arg1[%c0, %c0_0, %c0_1] : memref<2x8x32xf32, #tpu.memory_space<vmem>>, vector<2x8x32xf32>
    %1 = vector.shape_cast %0 : vector<2x8x32xf32> to vector<16x32xf32>
    %2 = arith.truncf %1 : vector<16x32xf32> to vector<16x32xbf16>
    %c0_2 = arith.constant 0 : index
    %c0_3 = arith.constant 0 : index
    %3 = vector.load %arg2[%c0_2, %c0_3] : memref<32x128xbf16, #tpu.memory_space<vmem>>, vector<32x128xbf16>
    %cst = arith.constant dense<0.000000e+00> : vector<16x128xf32>
    %4 = tpu.matmul %2, %3, %cst {dimension_numbers = #tpu.dot_dimension_numbers<[1], [0], [0], [1], [0, 0, 1, 1], [], []>} : vector<16x32xbf16>, vector<32x128xbf16>, vector<16x128xf32> -> vector<16x128xf32>
    %c0_4 = arith.constant 0 : index
    %c0_5 = arith.constant 0 : index
    %5 = vector.load %arg16[%c0_4, %c0_5] : memref<16x128xf32, #tpu.memory_space<vmem>>, vector<16x128xf32>
    tpu.vector_store %arg16[%c0_4, %c0_5], %4 {strides = array<i32>} : memref<16x128xf32, #tpu.memory_space<vmem>>, vector<16x128xf32>,
    %c0_6 = arith.constant 0 : index
    %c0_7 = arith.constant 0 : index
    %6 = vector.load %arg3[%c0_6, %c0_7] : memref<32x128xbf16, #tpu.memory_space<vmem>>, vector<32x128xbf16>
    %cst_8 = arith.constant dense<0.000000e+00> : vector<16x128xf32>
    %7 = tpu.matmul %2, %6, %cst_8 {dimension_numbers = #tpu.dot_dimension_numbers<[1], [0], [0], [1], [0, 0, 1, 1], [], []>} : vector<16x32xbf16>, vector<32x128xbf16>, vector<16x128xf32> -> vector<16x128xf32>
    %c0_9 = arith.constant 0 : index
    %c0_10 = arith.constant 0 : index
    %8 = vector.load %arg17[%c0_9, %c0_10] : memref<16x128xf32, #tpu.memory_space<vmem>>, vector<16x128xf32>
    tpu.vector_store %arg17[%c0_9, %c0_10], %7 {strides = array<i32>} : memref<16x128xf32, #tpu.memory_space<vmem>>, vector<16x128xf32>,
    %c0_11 = arith.constant 0 : index
    %c0_12 = arith.constant 0 : index
    %9 = vector.load %arg4[%c0_11, %c0_12] : memref<32x128xbf16, #tpu.memory_space<vmem>>, vector<32x128xbf16>
    %cst_13 = arith.constant dense<0.000000e+00> : vector<16x128xf32>
    %10 = tpu.matmul %2, %9, %cst_13 {dimension_numbers = #tpu.dot_dimension_numbers<[1], [0], [0], [1], [0, 0, 1, 1], [], []>} : vector<16x32xbf16>, vector<32x128xbf16>, vector<16x128xf32> -> vector<16x128xf32>
    %c0_14 = arith.constant 0 : index
    %c0_15 = arith.constant 0 : index
    %11 = vector.load %arg18[%c0_14, %c0_15] : memref<16x128xf32, #tpu.memory_space<vmem>>, vector<16x128xf32>
    tpu.vector_store %arg18[%c0_14, %c0_15], %10 {strides = array<i32>} : memref<16x128xf32, #tpu.memory_space<vmem>>, vector<16x128xf32>,
    %c0_16 = arith.constant 0 : index
    %c0_17 = arith.constant 0 : index
    %12 = vector.load %arg16[%c0_16, %c0_17] : memref<16x128xf32, #tpu.memory_space<vmem>>, vector<16x32xf32>
    %13 = vector.shape_cast %12 : vector<16x32xf32> to vector<2x8x32xf32>
    %14 = arith.truncf %13 : vector<2x8x32xf32> to vector<2x8x32xbf16>
    %c0_18 = arith.constant 0 : index
    %c0_19 = arith.constant 0 : index
    %15 = vector.load %arg17[%c0_18, %c0_19] : memref<16x128xf32, #tpu.memory_space<vmem>>, vector<16x32xf32>
    %16 = vector.shape_cast %15 : vector<16x32xf32> to vector<2x8x32xf32>
    %17 = arith.truncf %16 : vector<2x8x32xf32> to vector<2x8x32xbf16>
    %c0_20 = arith.constant 0 : index
    %c0_21 = arith.constant 0 : index
    %18 = vector.load %arg18[%c0_20, %c0_21] : memref<16x128xf32, #tpu.memory_space<vmem>>, vector<16x32xf32>
    %19 = vector.shape_cast %18 : vector<16x32xf32> to vector<2x8x32xf32>
    %20 = arith.truncf %19 : vector<2x8x32xf32> to vector<2x8x32xbf16>
    %cst_22 = arith.constant dense<0.000000e+00> : vector<2x8x8xf32>
    %21 = tpu.matmul %14, %17, %cst_22 {dimension_numbers = #tpu.dot_dimension_numbers<[2], [2], [1], [1], [0, 0, 0, 1, 1, 1], [0], [0]>} : vector<2x8x32xbf16>, vector<2x8x32xbf16>, vector<2x8x8xf32> -> vector<2x8x8xf32>
    %cst_23 = arith.constant 0.176776692 : f32
    %22 = vector.broadcast %cst_23 : f32 to vector<2x8x8xf32>
    %23 = arith.mulf %21, %22 : vector<2x8x8xf32>
    %cst_24 = arith.constant dense<0xFF800000> : vector<2x8xf32>
    %24 = vector.multi_reduction <maximumf>, %23, %cst_24 [2] : vector<2x8x8xf32> to vector<2x8xf32>
    %25 = vector.shape_cast %24 : vector<2x8xf32> to vector<2x8x1xf32>
    %26 = vector.broadcast %25 : vector<2x8x1xf32> to vector<2x8x8xf32>
    %27 = arith.subf %23, %26 : vector<2x8x8xf32>
    %28 = math.exp %27 : vector<2x8x8xf32>
    %cst_25 = arith.constant dense<0.000000e+00> : vector<2x8xf32>
    %29 = vector.multi_reduction <add>, %28, %cst_25 [2] : vector<2x8x8xf32> to vector<2x8xf32>
    %30 = vector.shape_cast %29 : vector<2x8xf32> to vector<2x8x1xf32>
    %31 = tpu.reciprocal %30 : vector<2x8x1xf32> -> vector<2x8x1xf32>
    %32 = vector.broadcast %31 : vector<2x8x1xf32> to vector<2x8x8xf32>
    %33 = arith.mulf %28, %32 : vector<2x8x8xf32>
    %34 = arith.truncf %33 : vector<2x8x8xf32> to vector<2x8x8xbf16>
    %cst_26 = arith.constant dense<0.000000e+00> : vector<2x8x32xf32>
    %35 = tpu.matmul %34, %20, %cst_26 {dimension_numbers = #tpu.dot_dimension_numbers<[2], [1], [1], [2], [0, 0, 0, 1, 1, 2], [0], [0]>} : vector<2x8x8xbf16>, vector<2x8x32xbf16>, vector<2x8x32xf32> -> vector<2x8x32xf32>
    %36 = vector.shape_cast %35 : vector<2x8x32xf32> to vector<16x32xf32>
    %c0_27 = arith.constant 0 : index
    %c0_28 = arith.constant 0 : index
    %37 = vector.load %arg19[%c0_27, %c0_28] : memref<16x128xf32, #tpu.memory_space<vmem>>, vector<16x32xf32>
    tpu.vector_store %arg19[%c0_27, %c0_28], %36 {strides = array<i32>} : memref<16x128xf32, #tpu.memory_space<vmem>>, vector<16x32xf32>,
    %c0_29 = arith.constant 0 : index
    %c32 = arith.constant 32 : index
    %38 = vector.load %arg16[%c0_29, %c32] : memref<16x128xf32, #tpu.memory_space<vmem>>, vector<16x32xf32>
    %39 = vector.shape_cast %38 : vector<16x32xf32> to vector<2x8x32xf32>
    %40 = arith.truncf %39 : vector<2x8x32xf32> to vector<2x8x32xbf16>
    %c0_30 = arith.constant 0 : index
    %c32_31 = arith.constant 32 : index
    %41 = vector.load %arg17[%c0_30, %c32_31] : memref<16x128xf32, #tpu.memory_space<vmem>>, vector<16x32xf32>
    %42 = vector.shape_cast %41 : vector<16x32xf32> to vector<2x8x32xf32>
    %43 = arith.truncf %42 : vector<2x8x32xf32> to vector<2x8x32xbf16>
    %c0_32 = arith.constant 0 : index
    %c32_33 = arith.constant 32 : index
    %44 = vector.load %arg18[%c0_32, %c32_33] : memref<16x128xf32, #tpu.memory_space<vmem>>, vector<16x32xf32>
    %45 = vector.shape_cast %44 : vector<16x32xf32> to vector<2x8x32xf32>
    %46 = arith.truncf %45 : vector<2x8x32xf32> to vector<2x8x32xbf16>
    %cst_34 = arith.constant dense<0.000000e+00> : vector<2x8x8xf32>
    %47 = tpu.matmul %40, %43, %cst_34 {dimension_numbers = #tpu.dot_dimension_numbers<[2], [2], [1], [1], [0, 0, 0, 1, 1, 1], [0], [0]>} : vector<2x8x32xbf16>, vector<2x8x32xbf16>, vector<2x8x8xf32> -> vector<2x8x8xf32>
    %cst_35 = arith.constant 0.176776692 : f32
    %48 = vector.broadcast %cst_35 : f32 to vector<2x8x8xf32>
    %49 = arith.mulf %47, %48 : vector<2x8x8xf32>
    %cst_36 = arith.constant dense<0xFF800000> : vector<2x8xf32>
    %50 = vector.multi_reduction <maximumf>, %49, %cst_36 [2] : vector<2x8x8xf32> to vector<2x8xf32>
    %51 = vector.shape_cast %50 : vector<2x8xf32> to vector<2x8x1xf32>
    %52 = vector.broadcast %51 : vector<2x8x1xf32> to vector<2x8x8xf32>
    %53 = arith.subf %49, %52 : vector<2x8x8xf32>
    %54 = math.exp %53 : vector<2x8x8xf32>
    %cst_37 = arith.constant dense<0.000000e+00> : vector<2x8xf32>
    %55 = vector.multi_reduction <add>, %54, %cst_37 [2] : vector<2x8x8xf32> to vector<2x8xf32>
    %56 = vector.shape_cast %55 : vector<2x8xf32> to vector<2x8x1xf32>
    %57 = tpu.reciprocal %56 : vector<2x8x1xf32> -> vector<2x8x1xf32>
    %58 = vector.broadcast %57 : vector<2x8x1xf32> to vector<2x8x8xf32>
    %59 = arith.mulf %54, %58 : vector<2x8x8xf32>
    %60 = arith.truncf %59 : vector<2x8x8xf32> to vector<2x8x8xbf16>
    %cst_38 = arith.constant dense<0.000000e+00> : vector<2x8x32xf32>
    %61 = tpu.matmul %60, %46, %cst_38 {dimension_numbers = #tpu.dot_dimension_numbers<[2], [1], [1], [2], [0, 0, 0, 1, 1, 2], [0], [0]>} : vector<2x8x8xbf16>, vector<2x8x32xbf16>, vector<2x8x32xf32> -> vector<2x8x32xf32>
    %62 = vector.shape_cast %61 : vector<2x8x32xf32> to vector<16x32xf32>
    %c0_39 = arith.constant 0 : index
    %c32_40 = arith.constant 32 : index
    %63 = vector.load %arg19[%c0_39, %c32_40] : memref<16x128xf32, #tpu.memory_space<vmem>>, vector<16x32xf32>
    tpu.vector_store %arg19[%c0_39, %c32_40], %62 {strides = array<i32>} : memref<16x128xf32, #tpu.memory_space<vmem>>, vector<16x32xf32>,
    %c0_41 = arith.constant 0 : index
    %c64 = arith.constant 64 : index
    %64 = vector.load %arg16[%c0_41, %c64] : memref<16x128xf32, #tpu.memory_space<vmem>>, vector<16x32xf32>
    %65 = vector.shape_cast %64 : vector<16x32xf32> to vector<2x8x32xf32>
    %66 = arith.truncf %65 : vector<2x8x32xf32> to vector<2x8x32xbf16>
    %c0_42 = arith.constant 0 : index
    %c64_43 = arith.constant 64 : index
    %67 = vector.load %arg17[%c0_42, %c64_43] : memref<16x128xf32, #tpu.memory_space<vmem>>, vector<16x32xf32>
    %68 = vector.shape_cast %67 : vector<16x32xf32> to vector<2x8x32xf32>
    %69 = arith.truncf %68 : vector<2x8x32xf32> to vector<2x8x32xbf16>
    %c0_44 = arith.constant 0 : index
    %c64_45 = arith.constant 64 : index
    %70 = vector.load %arg18[%c0_44, %c64_45] : memref<16x128xf32, #tpu.memory_space<vmem>>, vector<16x32xf32>
    %71 = vector.shape_cast %70 : vector<16x32xf32> to vector<2x8x32xf32>
    %72 = arith.truncf %71 : vector<2x8x32xf32> to vector<2x8x32xbf16>
    %cst_46 = arith.constant dense<0.000000e+00> : vector<2x8x8xf32>
    %73 = tpu.matmul %66, %69, %cst_46 {dimension_numbers = #tpu.dot_dimension_numbers<[2], [2], [1], [1], [0, 0, 0, 1, 1, 1], [0], [0]>} : vector<2x8x32xbf16>, vector<2x8x32xbf16>, vector<2x8x8xf32> -> vector<2x8x8xf32>
    %cst_47 = arith.constant 0.176776692 : f32
    %74 = vector.broadcast %cst_47 : f32 to vector<2x8x8xf32>
    %75 = arith.mulf %73, %74 : vector<2x8x8xf32>
    %cst_48 = arith.constant dense<0xFF800000> : vector<2x8xf32>
    %76 = vector.multi_reduction <maximumf>, %75, %cst_48 [2] : vector<2x8x8xf32> to vector<2x8xf32>
    %77 = vector.shape_cast %76 : vector<2x8xf32> to vector<2x8x1xf32>
    %78 = vector.broadcast %77 : vector<2x8x1xf32> to vector<2x8x8xf32>
    %79 = arith.subf %75, %78 : vector<2x8x8xf32>
    %80 = math.exp %79 : vector<2x8x8xf32>
    %cst_49 = arith.constant dense<0.000000e+00> : vector<2x8xf32>
    %81 = vector.multi_reduction <add>, %80, %cst_49 [2] : vector<2x8x8xf32> to vector<2x8xf32>
    %82 = vector.shape_cast %81 : vector<2x8xf32> to vector<2x8x1xf32>
    %83 = tpu.reciprocal %82 : vector<2x8x1xf32> -> vector<2x8x1xf32>
    %84 = vector.broadcast %83 : vector<2x8x1xf32> to vector<2x8x8xf32>
    %85 = arith.mulf %80, %84 : vector<2x8x8xf32>
    %86 = arith.truncf %85 : vector<2x8x8xf32> to vector<2x8x8xbf16>
    %cst_50 = arith.constant dense<0.000000e+00> : vector<2x8x32xf32>
    %87 = tpu.matmul %86, %72, %cst_50 {dimension_numbers = #tpu.dot_dimension_numbers<[2], [1], [1], [2], [0, 0, 0, 1, 1, 2], [0], [0]>} : vector<2x8x8xbf16>, vector<2x8x32xbf16>, vector<2x8x32xf32> -> vector<2x8x32xf32>
    %88 = vector.shape_cast %87 : vector<2x8x32xf32> to vector<16x32xf32>
    %c0_51 = arith.constant 0 : index
    %c64_52 = arith.constant 64 : index
    %89 = vector.load %arg19[%c0_51, %c64_52] : memref<16x128xf32, #tpu.memory_space<vmem>>, vector<16x32xf32>
    tpu.vector_store %arg19[%c0_51, %c64_52], %88 {strides = array<i32>} : memref<16x128xf32, #tpu.memory_space<vmem>>, vector<16x32xf32>,
    %c0_53 = arith.constant 0 : index
    %c96 = arith.constant 96 : index
    %90 = vector.load %arg16[%c0_53, %c96] : memref<16x128xf32, #tpu.memory_space<vmem>>, vector<16x32xf32>
    %91 = vector.shape_cast %90 : vector<16x32xf32> to vector<2x8x32xf32>
    %92 = arith.truncf %91 : vector<2x8x32xf32> to vector<2x8x32xbf16>
    %c0_54 = arith.constant 0 : index
    %c96_55 = arith.constant 96 : index
    %93 = vector.load %arg17[%c0_54, %c96_55] : memref<16x128xf32, #tpu.memory_space<vmem>>, vector<16x32xf32>
    %94 = vector.shape_cast %93 : vector<16x32xf32> to vector<2x8x32xf32>
    %95 = arith.truncf %94 : vector<2x8x32xf32> to vector<2x8x32xbf16>
    %c0_56 = arith.constant 0 : index
    %c96_57 = arith.constant 96 : index
    %96 = vector.load %arg18[%c0_56, %c96_57] : memref<16x128xf32, #tpu.memory_space<vmem>>, vector<16x32xf32>
    %97 = vector.shape_cast %96 : vector<16x32xf32> to vector<2x8x32xf32>
    %98 = arith.truncf %97 : vector<2x8x32xf32> to vector<2x8x32xbf16>
    %cst_58 = arith.constant dense<0.000000e+00> : vector<2x8x8xf32>
    %99 = tpu.matmul %92, %95, %cst_58 {dimension_numbers = #tpu.dot_dimension_numbers<[2], [2], [1], [1], [0, 0, 0, 1, 1, 1], [0], [0]>} : vector<2x8x32xbf16>, vector<2x8x32xbf16>, vector<2x8x8xf32> -> vector<2x8x8xf32>
    %cst_59 = arith.constant 0.176776692 : f32
    %100 = vector.broadcast %cst_59 : f32 to vector<2x8x8xf32>
    %101 = arith.mulf %99, %100 : vector<2x8x8xf32>
    %cst_60 = arith.constant dense<0xFF800000> : vector<2x8xf32>
    %102 = vector.multi_reduction <maximumf>, %101, %cst_60 [2] : vector<2x8x8xf32> to vector<2x8xf32>
    %103 = vector.shape_cast %102 : vector<2x8xf32> to vector<2x8x1xf32>
    %104 = vector.broadcast %103 : vector<2x8x1xf32> to vector<2x8x8xf32>
    %105 = arith.subf %101, %104 : vector<2x8x8xf32>
    %106 = math.exp %105 : vector<2x8x8xf32>
    %cst_61 = arith.constant dense<0.000000e+00> : vector<2x8xf32>
    %107 = vector.multi_reduction <add>, %106, %cst_61 [2] : vector<2x8x8xf32> to vector<2x8xf32>
    %108 = vector.shape_cast %107 : vector<2x8xf32> to vector<2x8x1xf32>
    %109 = tpu.reciprocal %108 : vector<2x8x1xf32> -> vector<2x8x1xf32>
    %110 = vector.broadcast %109 : vector<2x8x1xf32> to vector<2x8x8xf32>
    %111 = arith.mulf %106, %110 : vector<2x8x8xf32>
    %112 = arith.truncf %111 : vector<2x8x8xf32> to vector<2x8x8xbf16>
    %cst_62 = arith.constant dense<0.000000e+00> : vector<2x8x32xf32>
    %113 = tpu.matmul %112, %98, %cst_62 {dimension_numbers = #tpu.dot_dimension_numbers<[2], [1], [1], [2], [0, 0, 0, 1, 1, 2], [0], [0]>} : vector<2x8x8xbf16>, vector<2x8x32xbf16>, vector<2x8x32xf32> -> vector<2x8x32xf32>
    %114 = vector.shape_cast %113 : vector<2x8x32xf32> to vector<16x32xf32>
    %c0_63 = arith.constant 0 : index
    %c96_64 = arith.constant 96 : index
    %115 = vector.load %arg19[%c0_63, %c96_64] : memref<16x128xf32, #tpu.memory_space<vmem>>, vector<16x32xf32>
    tpu.vector_store %arg19[%c0_63, %c96_64], %114 {strides = array<i32>} : memref<16x128xf32, #tpu.memory_space<vmem>>, vector<16x32xf32>,
    %c0_65 = arith.constant 0 : index
    %c0_66 = arith.constant 0 : index
    %116 = vector.load %arg19[%c0_65, %c0_66] : memref<16x128xf32, #tpu.memory_space<vmem>>, vector<16x128xf32>
    %117 = arith.truncf %116 : vector<16x128xf32> to vector<16x128xbf16>
    %c0_67 = arith.constant 0 : index
    %c0_68 = arith.constant 0 : index
    %118 = vector.load %arg5[%c0_67, %c0_68] : memref<128x32xbf16, #tpu.memory_space<vmem>>, vector<128x32xbf16>
    %cst_69 = arith.constant dense<0.000000e+00> : vector<16x32xf32>
    %119 = tpu.matmul %117, %118, %cst_69 {dimension_numbers = #tpu.dot_dimension_numbers<[1], [0], [0], [1], [0, 0, 1, 1], [], []>} : vector<16x128xbf16>, vector<128x32xbf16>, vector<16x32xf32> -> vector<16x32xf32>
    %c0_70 = arith.constant 0 : index
    %c0_71 = arith.constant 0 : index
    %120 = vector.load %arg6[%c0_70, %c0_71] : memref<1x32xf32, #tpu.memory_space<vmem>>, vector<1x32xf32>
    %121 = vector.broadcast %120 : vector<1x32xf32> to vector<16x32xf32>
    %122 = arith.addf %119, %121 : vector<16x32xf32>
    %123 = arith.addf %122, %1 : vector<16x32xf32>
    %c0_72 = arith.constant 0 : index
    %c0_73 = arith.constant 0 : index
    %124 = vector.load %arg7[%c0_72, %c0_73] : memref<1x32xf32, #tpu.memory_space<vmem>>, vector<1x32xf32>
    %c0_74 = arith.constant 0 : index
    %c0_75 = arith.constant 0 : index
    %125 = vector.load %arg8[%c0_74, %c0_75] : memref<1x32xf32, #tpu.memory_space<vmem>>, vector<1x32xf32>
    %cst_76 = arith.constant dense<0.000000e+00> : vector<16xf32>
    %126 = vector.multi_reduction <add>, %123, %cst_76 [1] : vector<16x32xf32> to vector<16xf32>
    %127 = vector.shape_cast %126 : vector<16xf32> to vector<16x1xf32>
    %cst_77 = arith.constant 3.200000e+01 : f32
    %128 = vector.broadcast %cst_77 : f32 to vector<16x1xf32>
    %129 = arith.divf %127, %128 : vector<16x1xf32>
    %130 = vector.broadcast %129 : vector<16x1xf32> to vector<16x32xf32>
    %131 = arith.subf %123, %130 : vector<16x32xf32>
    %132 = arith.mulf %131, %131 : vector<16x32xf32>
    %cst_78 = arith.constant dense<0.000000e+00> : vector<16xf32>
    %133 = vector.multi_reduction <add>, %132, %cst_78 [1] : vector<16x32xf32> to vector<16xf32>
    %134 = vector.shape_cast %133 : vector<16xf32> to vector<16x1xf32>
    %cst_79 = arith.constant 3.200000e+01 : f32
    %135 = vector.broadcast %cst_79 : f32 to vector<16x1xf32>
    %136 = arith.divf %134, %135 : vector<16x1xf32>
    %137 = vector.broadcast %129 : vector<16x1xf32> to vector<16x32xf32>
    %138 = arith.subf %123, %137 : vector<16x32xf32>
    %cst_80 = arith.constant 9.99999974E-6 : f32
    %139 = vector.broadcast %cst_80 : f32 to vector<16x1xf32>
    %140 = arith.addf %136, %139 : vector<16x1xf32>
    %141 = math.rsqrt %140 : vector<16x1xf32>
    %142 = vector.broadcast %141 : vector<16x1xf32> to vector<16x32xf32>
    %143 = arith.mulf %138, %142 : vector<16x32xf32>
    %144 = vector.broadcast %124 : vector<1x32xf32> to vector<16x32xf32>
    %145 = arith.mulf %143, %144 : vector<16x32xf32>
    %146 = vector.broadcast %125 : vector<1x32xf32> to vector<16x32xf32>
    %147 = arith.addf %145, %146 : vector<16x32xf32>
    %148 = arith.truncf %147 : vector<16x32xf32> to vector<16x32xbf16>
    %c0_81 = arith.constant 0 : index
    %c0_82 = arith.constant 0 : index
    %149 = vector.load %arg9[%c0_81, %c0_82] : memref<32x128xbf16, #tpu.memory_space<vmem>>, vector<32x128xbf16>
    %cst_83 = arith.constant dense<0.000000e+00> : vector<16x128xf32>
    %150 = tpu.matmul %148, %149, %cst_83 {dimension_numbers = #tpu.dot_dimension_numbers<[1], [0], [0], [1], [0, 0, 1, 1], [], []>} : vector<16x32xbf16>, vector<32x128xbf16>, vector<16x128xf32> -> vector<16x128xf32>
    %c0_84 = arith.constant 0 : index
    %c0_85 = arith.constant 0 : index
    %151 = vector.load %arg10[%c0_84, %c0_85] : memref<1x128xf32, #tpu.memory_space<vmem>>, vector<1x128xf32>
    %152 = vector.broadcast %151 : vector<1x128xf32> to vector<16x128xf32>
    %153 = arith.addf %150, %152 : vector<16x128xf32>
    %cst_86 = arith.constant 0.000000e+00 : f32
    %154 = vector.broadcast %cst_86 : f32 to vector<16x128xf32>
    %155 = arith.maximumf %153, %154 : vector<16x128xf32>
    %156 = arith.truncf %155 : vector<16x128xf32> to vector<16x128xbf16>
    %c0_87 = arith.constant 0 : index
    %c0_88 = arith.constant 0 : index
    %157 = vector.load %arg11[%c0_87, %c0_88] : memref<128x32xbf16, #tpu.memory_space<vmem>>, vector<128x32xbf16>
    %cst_89 = arith.constant dense<0.000000e+00> : vector<16x32xf32>
    %158 = tpu.matmul %156, %157, %cst_89 {dimension_numbers = #tpu.dot_dimension_numbers<[1], [0], [0], [1], [0, 0, 1, 1], [], []>} : vector<16x128xbf16>, vector<128x32xbf16>, vector<16x32xf32> -> vector<16x32xf32>
    %c0_90 = arith.constant 0 : index
    %c0_91 = arith.constant 0 : index
    %159 = vector.load %arg12[%c0_90, %c0_91] : memref<1x32xf32, #tpu.memory_space<vmem>>, vector<1x32xf32>
    %160 = vector.broadcast %159 : vector<1x32xf32> to vector<16x32xf32>
    %161 = arith.addf %158, %160 : vector<16x32xf32>
    %162 = arith.addf %161, %147 : vector<16x32xf32>
    %c0_92 = arith.constant 0 : index
    %c0_93 = arith.constant 0 : index
    %163 = vector.load %arg13[%c0_92, %c0_93] : memref<1x32xf32, #tpu.memory_space<vmem>>, vector<1x32xf32>
    %c0_94 = arith.constant 0 : index
    %c0_95 = arith.constant 0 : index
    %164 = vector.load %arg14[%c0_94, %c0_95] : memref<1x32xf32, #tpu.memory_space<vmem>>, vector<1x32xf32>
    %cst_96 = arith.constant dense<0.000000e+00> : vector<16xf32>
    %165 = vector.multi_reduction <add>, %162, %cst_96 [1] : vector<16x32xf32> to vector<16xf32>
    %166 = vector.shape_cast %165 : vector<16xf32> to vector<16x1xf32>
    %cst_97 = arith.constant 3.200000e+01 : f32
    %167 = vector.broadcast %cst_97 : f32 to vector<16x1xf32>
    %168 = arith.divf %166, %167 : vector<16x1xf32>
    %169 = vector.broadcast %168 : vector<16x1xf32> to vector<16x32xf32>
    %170 = arith.subf %162, %169 : vector<16x32xf32>
    %171 = arith.mulf %170, %170 : vector<16x32xf32>
    %cst_98 = arith.constant dense<0.000000e+00> : vector<16xf32>
    %172 = vector.multi_reduction <add>, %171, %cst_98 [1] : vector<16x32xf32> to vector<16xf32>
    %173 = vector.shape_cast %172 : vector<16xf32> to vector<16x1xf32>
    %cst_99 = arith.constant 3.200000e+01 : f32
    %174 = vector.broadcast %cst_99 : f32 to vector<16x1xf32>
    %175 = arith.divf %173, %174 : vector<16x1xf32>
    %176 = vector.broadcast %168 : vector<16x1xf32> to vector<16x32xf32>
    %177 = arith.subf %162, %176 : vector<16x32xf32>
    %cst_100 = arith.constant 9.99999974E-6 : f32
    %178 = vector.broadcast %cst_100 : f32 to vector<16x1xf32>
    %179 = arith.addf %175, %178 : vector<16x1xf32>
    %180 = math.rsqrt %179 : vector<16x1xf32>
    %181 = vector.broadcast %180 : vector<16x1xf32> to vector<16x32xf32>
    %182 = arith.mulf %177, %181 : vector<16x32xf32>
    %183 = vector.broadcast %163 : vector<1x32xf32> to vector<16x32xf32>
    %184 = arith.mulf %182, %183 : vector<16x32xf32>
    %185 = vector.broadcast %164 : vector<1x32xf32> to vector<16x32xf32>
    %186 = arith.addf %184, %185 : vector<16x32xf32>
    %187 = vector.shape_cast %186 : vector<16x32xf32> to vector<2x8x32xf32>
    %c0_101 = arith.constant 0 : index
    %c0_102 = arith.constant 0 : index
    %c0_103 = arith.constant 0 : index
    %188 = vector.load %arg15[%c0_101, %c0_102, %c0_103] : memref<2x8x32xf32, #tpu.memory_space<vmem>>, vector<2x8x32xf32>
    tpu.vector_store %arg15[%c0_101, %c0_102, %c0_103], %187 {strides = array<i32>} : memref<2x8x32xf32, #tpu.memory_space<vmem>>, vector<2x8x32xf32>,
    return
  }
  func.func @transform_0(%arg0: i32) -> (i32, i32, i32) {
    %c0_i32 = arith.constant 0 : i32
    %c0_i32_0 = arith.constant 0 : i32
    %c0_i32_1 = arith.constant 0 : i32
    return %arg0, %c0_i32, %c0_i32_0 : i32, i32, i32
  }
  func.func @transform_1(%arg0: i32) -> (i32, i32) {
    %c0_i32 = arith.constant 0 : i32
    %c0_i32_0 = arith.constant 0 : i32
    %c0_i32_1 = arith.constant 0 : i32
    return %c0_i32, %c0_i32_0 : i32, i32
  }
  func.func @transform_2(%arg0: i32) -> (i32, i32) {
    %c0_i32 = arith.constant 0 : i32
    %c0_i32_0 = arith.constant 0 : i32
    %c0_i32_1 = arith.constant 0 : i32
    return %c0_i32, %c0_i32_0 : i32, i32
  }
  func.func @transform_3(%arg0: i32) -> (i32, i32) {
    %c0_i32 = arith.constant 0 : i32
    %c0_i32_0 = arith.constant 0 : i32
    %c0_i32_1 = arith.constant 0 : i32
    return %c0_i32, %c0_i32_0 : i32, i32
  }
  func.func @transform_4(%arg0: i32) -> (i32, i32) {
    %c0_i32 = arith.constant 0 : i32
    %c0_i32_0 = arith.constant 0 : i32
    %c0_i32_1 = arith.constant 0 : i32
    return %c0_i32, %c0_i32_0 : i32, i32
  }
  func.func @transform_5(%arg0: i32) -> (i32, i32) {
    %c0_i32 = arith.constant 0 : i32
    %c0_i32_0 = arith.constant 0 : i32
    %c0_i32_1 = arith.constant 0 : i32
    return %c0_i32, %c0_i32_0 : i32, i32
  }
  func.func @transform_6(%arg0: i32) -> (i32, i32) {
    %c0_i32 = arith.constant 0 : i32
    %c0_i32_0 = arith.constant 0 : i32
    %c0_i32_1 = arith.constant 0 : i32
    return %c0_i32, %c0_i32_0 : i32, i32
  }
  func.func @transform_7(%arg0: i32) -> (i32, i32) {
    %c0_i32 = arith.constant 0 : i32
    %c0_i32_0 = arith.constant 0 : i32
    %c0_i32_1 = arith.constant 0 : i32
    return %c0_i32, %c0_i32_0 : i32, i32
  }
  func.func @transform_8(%arg0: i32) -> (i32, i32) {
    %c0_i32 = arith.constant 0 : i32
    %c0_i32_0 = arith.constant 0 : i32
    %c0_i32_1 = arith.constant 0 : i32
    return %c0_i32, %c0_i32_0 : i32, i32
  }
  func.func @transform_9(%arg0: i32) -> (i32, i32) {
    %c0_i32 = arith.constant 0 : i32
    %c0_i32_0 = arith.constant 0 : i32
    %c0_i32_1 = arith.constant 0 : i32
    return %c0_i32, %c0_i32_0 : i32, i32
  }
  func.func @transform_10(%arg0: i32) -> (i32, i32) {
    %c0_i32 = arith.constant 0 : i32
    %c0_i32_0 = arith.constant 0 : i32
    %c0_i32_1 = arith.constant 0 : i32
    return %c0_i32, %c0_i32_0 : i32, i32
  }
  func.func @transform_11(%arg0: i32) -> (i32, i32) {
    %c0_i32 = arith.constant 0 : i32
    %c0_i32_0 = arith.constant 0 : i32
    %c0_i32_1 = arith.constant 0 : i32
    return %c0_i32, %c0_i32_0 : i32, i32
  }
  func.func @transform_12(%arg0: i32) -> (i32, i32) {
    %c0_i32 = arith.constant 0 : i32
    %c0_i32_0 = arith.constant 0 : i32
    %c0_i32_1 = arith.constant 0 : i32
    return %c0_i32, %c0_i32_0 : i32, i32
  }
  func.func @transform_13(%arg0: i32) -> (i32, i32) {
    %c0_i32 = arith.constant 0 : i32
    %c0_i32_0 = arith.constant 0 : i32
    %c0_i32_1 = arith.constant 0 : i32
    return %c0_i32, %c0_i32_0 : i32, i32
  }
  func.func @transform_14(%arg0: i32) -> (i32, i32, i32) {
    %c0_i32 = arith.constant 0 : i32
    %c0_i32_0 = arith.constant 0 : i32
    %c0_i32_1 = arith.constant 0 : i32
    return %arg0, %c0_i32, %c0_i32_0 : i32, i32, i32
  }
}

</mosaic_0001>

<llo_original>
// kernel: tpu_custom_call.1
$region0: #{tpu_custom_call.1}
  #allocation0 [shape = 'u32[]', space=smem, size = 0x4, offset = 0x4, fixed_abs, tag = 'smem constant byte address 0x4 - core index']
  #allocation1 [shape = 'u32[144,128]{1,0:T(1,128)}', space=vmem, size = 0x12000, scoped, tag = 'internal scratch']
  #allocation2 [shape = 'f32[16,128]{1,0:T(8,128)}', space=vmem, size = 0x2000, scoped, tag = 'scratch operand']
  #allocation3 [shape = 'f32[16,128]{1,0:T(8,128)}', space=vmem, size = 0x2000, scoped, tag = 'scratch operand']
  #allocation4 [shape = 'f32[16,128]{1,0:T(8,128)}', space=vmem, size = 0x2000, scoped, tag = 'scratch operand']
  #allocation5 [shape = 'f32[16,128]{1,0:T(8,128)}', space=vmem, size = 0x2000, scoped, tag = 'scratch operand']
  %s0 = inlined_call_operand.vmem [shape: f32[2,8,32], index: 0, kind: input, shape index: {}]
  %s1 = inlined_call_operand.vmem [shape: bf16[32,128], index: 1, kind: input, shape index: {}]
  %s2 = inlined_call_operand.vmem [shape: bf16[32,128], index: 2, kind: input, shape index: {}]
  %s3 = inlined_call_operand.vmem [shape: bf16[32,128], index: 3, kind: input, shape index: {}]
  %s4 = inlined_call_operand.vmem [shape: bf16[128,32], index: 4, kind: input, shape index: {}]
  %s5 = inlined_call_operand.vmem [shape: f32[1,32], index: 5, kind: input, shape index: {}]
  %s6 = inlined_call_operand.vmem [shape: f32[1,32], index: 6, kind: input, shape index: {}]
  %s7 = inlined_call_operand.vmem [shape: f32[1,32], index: 7, kind: input, shape index: {}]
  %s8 = inlined_call_operand.vmem [shape: bf16[32,128], index: 8, kind: input, shape index: {}]
  %s9 = inlined_call_operand.vmem [shape: f32[1,128], index: 9, kind: input, shape index: {}]
  %s10 = inlined_call_operand.vmem [shape: bf16[128,32], index: 10, kind: input, shape index: {}]
  %s11 = inlined_call_operand.vmem [shape: f32[1,32], index: 11, kind: input, shape index: {}]
  %s12 = inlined_call_operand.vmem [shape: f32[1,32], index: 12, kind: input, shape index: {}]
  %s13 = inlined_call_operand.vmem [shape: f32[1,32], index: 13, kind: input, shape index: {}]
  %s14 = inlined_call_operand.hbm [shape: f32[2,8,32], index: 14, kind: output, shape index: {}]
  %s15 = sld [smem:[#allocation0]]
  $region66: #{tpu_custom_call.1} parent=0
    _
  %s17 = ssub.s32 1, %s15
  %s18 = scalar_select 0, %s17, %s15
  $region1: #{tpu_custom_call.1} parent=0
    #allocation6 [shape = 'u8[8192]{0}', space=vmem, size = 0x2000, scoped, tag = 'output window, operand 0, single buffered']
    #allocation7 [shape = 's32[1]{0}', space=sflag, size = 0x4, scoped, tag = 'scoped memory for tpu_custom_call.1']
    %19 = vsyncpa [#allocation7], 0
    // Predicated region
    $region2: #{tpu_custom_call.1} parent=1 // pred_check
      _
    $region3: #{tpu_custom_call.1} parent=1 // pred_check_branch
      %21 = sbr.rel (0) target = $region5
    $region4: #{tpu_custom_call.1} parent=1 // pred_region
      _
    $region5: #{tpu_custom_call.1} parent=1 // pred_fallthru
      _
    // Predicated region
    $region6: #{tpu_custom_call.1} parent=1 // pred_check
      _
    $region7: #{tpu_custom_call.1} parent=1 // pred_check_branch
      %23 = sbr.rel (0) target = $region9
    $region8: #{tpu_custom_call.1} parent=1 // pred_region
      _
    $region9: #{tpu_custom_call.1} parent=1 // pred_fallthru
      _
    // Predicated region
    $region10: #{tpu_custom_call.1} parent=1 // pred_check
      _
    $region11: #{tpu_custom_call.1} parent=1 // pred_check_branch
      %25 = sbr.rel (0) target = $region13
    $region12: #{tpu_custom_call.1} parent=1 // pred_region
      _
    $region13: #{tpu_custom_call.1} parent=1 // pred_fallthru
      _
    // Predicated region
    $region14: #{tpu_custom_call.1} parent=1 // pred_check
      _
    $region15: #{tpu_custom_call.1} parent=1 // pred_check_branch
      %27 = sbr.rel (0) target = $region17
    $region16: #{tpu_custom_call.1} parent=1 // pred_region
      _
    $region17: #{tpu_custom_call.1} parent=1 // pred_fallthru
      _
    // Predicated region
    $region18: #{tpu_custom_call.1} parent=1 // pred_check
      _
    $region19: #{tpu_custom_call.1} parent=1 // pred_check_branch
      %29 = sbr.rel (0) target = $region21
    $region20: #{tpu_custom_call.1} parent=1 // pred_region
      _
    $region21: #{tpu_custom_call.1} parent=1 // pred_fallthru
      _
    // Predicated region
    $region22: #{tpu_custom_call.1} parent=1 // pred_check
      _
    $region23: #{tpu_custom_call.1} parent=1 // pred_check_branch
      %31 = sbr.rel (0) target = $region25
    $region24: #{tpu_custom_call.1} parent=1 // pred_region
      _
    $region25: #{tpu_custom_call.1} parent=1 // pred_fallthru
      _
    // Predicated region
    $region26: #{tpu_custom_call.1} parent=1 // pred_check
      _
    $region27: #{tpu_custom_call.1} parent=1 // pred_check_branch
      %33 = sbr.rel (0) target = $region29
    $region28: #{tpu_custom_call.1} parent=1 // pred_region
      _
    $region29: #{tpu_custom_call.1} parent=1 // pred_fallthru
      _
    // Predicated region
    $region30: #{tpu_custom_call.1} parent=1 // pred_check
      _
    $region31: #{tpu_custom_call.1} parent=1 // pred_check_branch
      %35 = sbr.rel (0) target = $region33
    $region32: #{tpu_custom_call.1} parent=1 // pred_region
      _
    $region33: #{tpu_custom_call.1} parent=1 // pred_fallthru
      _
    // Predicated region
    $region34: #{tpu_custom_call.1} parent=1 // pred_check
      _
    $region35: #{tpu_custom_call.1} parent=1 // pred_check_branch
      %37 = sbr.rel (0) target = $region37
    $region36: #{tpu_custom_call.1} parent=1 // pred_region
      _
    $region37: #{tpu_custom_call.1} parent=1 // pred_fallthru
      _
    // Predicated region
    $region38: #{tpu_custom_call.1} parent=1 // pred_check
      _
    $region39: #{tpu_custom_call.1} parent=1 // pred_check_branch
      %39 = sbr.rel (0) target = $region41
    $region40: #{tpu_custom_call.1} parent=1 // pred_region
      _
    $region41: #{tpu_custom_call.1} parent=1 // pred_fallthru
      _
    // Predicated region
    $region42: #{tpu_custom_call.1} parent=1 // pred_check
      _
    $region43: #{tpu_custom_call.1} parent=1 // pred_check_branch
      %41 = sbr.rel (0) target = $region45
    $region44: #{tpu_custom_call.1} parent=1 // pred_region
      _
    $region45: #{tpu_custom_call.1} parent=1 // pred_fallthru
      _
    // Predicated region
    $region46: #{tpu_custom_call.1} parent=1 // pred_check
      _
    $region47: #{tpu_custom_call.1} parent=1 // pred_check_branch
      %43 = sbr.rel (0) target = $region49
    $region48: #{tpu_custom_call.1} parent=1 // pred_region
      _
    $region49: #{tpu_custom_call.1} parent=1 // pred_fallthru
      _
    // Predicated region
    $region50: #{tpu_custom_call.1} parent=1 // pred_check
      _
    $region51: #{tpu_custom_call.1} parent=1 // pred_check_branch
      %45 = sbr.rel (0) target = $region53
    $region52: #{tpu_custom_call.1} parent=1 // pred_region
      _
    $region53: #{tpu_custom_call.1} parent=1 // pred_fallthru
      _
    // Predicated region
    $region54: #{tpu_custom_call.1} parent=1 // pred_check
      _
    $region55: #{tpu_custom_call.1} parent=1 // pred_check_branch
      %47 = sbr.rel (0) target = $region57
    $region56: #{tpu_custom_call.1} parent=1 // pred_region
      _
    $region57: #{tpu_custom_call.1} parent=1 // pred_fallthru
      _
    %v49 = vld [vmem:[%s0] sm:$0xff]
    %v50 = vld [vmem:[%s0 + $0x8] sm:$0xff]
    %v51 = vpack.c.bf16 %v50, %v49
    %v52 = vld [vmem:[%s1] sm:$0xf]
    %v53 = vld [vmem:[%s1 + $0x4] sm:$0xf]
    %v54 = vld [vmem:[%s1 + $0x8] sm:$0xf]
    %v55 = vld [vmem:[%s1 + $0xc] sm:$0xf]
    %v60 = vunpack.c.l.b16 %v52
    %v61 = vunpack.c.l.b16 %v53
    %v62 = vunpack.c.l.b16 %v54
    %v63 = vunpack.c.l.b16 %v55
    %v64 = vpack.c.b16 %v61, %v60
    %v65 = vpack.c.b16 %v63, %v62
    %vm68 = vcmask 261120
    %v70 = vsel %vm68, %v51, 0
    %72 = vmatprep.subr.bf16.mxu0 0
    %73 = vmatpush1.bf16.msra.mxu0 0
    %74 = vmatprep.subr.bf16.mxu0 0
    %75 = vmatpush1.bf16.msra.mxu0 0
    %76 = vmatprep.subr.bf16.mxu0 0
    %77 = vmatpush1.bf16.msra.mxu0 0
    %78 = vmatprep.subr.bf16.mxu0 0
    %79 = vmatpush1.bf16.msra.mxu0 0
    %80 = vmatprep.subr.bf16.mxu0 0
    %81 = vmatpush1.bf16.msra.mxu0 0
    %82 = vmatprep.subr.bf16.mxu0 0
    %83 = vmatpush1.bf16.msra.mxu0 0
    %84 = vmatprep.subr.bf16.mxu0 0
    %85 = vmatpush1.bf16.msra.mxu0 %v65
    %86 = vmatprep.subr.bf16.mxu0 0
    %87 = vmatpush1.bf16.msra.mxu0 %v64
    %88 = vmatprep.subr.bf16.mxu0 0
    %89 = vmatpush2.bf16.msra.mxu0 0
    %90 = vmatprep.subr.bf16.mxu0 0
    %91 = vmatpush2.bf16.msra.mxu0 0
    %92 = vmatprep.subr.bf16.mxu0 0
    %93 = vmatpush2.bf16.msra.mxu0 0
    %94 = vmatprep.subr.bf16.mxu0 0
    %95 = vmatpush2.bf16.msra.mxu0 0
    %96 = vmatprep.subr.bf16.mxu0 0
    %97 = vmatpush2.bf16.msra.mxu0 0
    %98 = vmatprep.subr.bf16.mxu0 0
    %99 = vmatpush2.bf16.msra.mxu0 0
    %100 = vmatprep.subr.bf16.mxu0 0
    %101 = vmatpush2.bf16.msra.mxu0 0
    %102 = vmatprep.subr.bf16.mxu0 0
    %103 = vmatpush2.bf16.msra.mxu0 0
    %104 = vmatprep.mubr.bf16.mxu0 0
    %105 = vmatmul.mubr.bf16.gmra.mxu0 %v70
    %v106 = vpop.f32.mrf.mxu0
    %v107 = vadd.f32 0.0, %v106
    %v108 = vpop.f32.mrf.mxu0
    %v109 = vpop.f32.mrf.mxu0
    %v110 = vadd.f32 0.0, %v109
    %v111 = vpop.f32.mrf.mxu0
    %112 = vdwg.mxu0
    %113 = vst [vmem:[#allocation2] sm:$0xff] %v107
    %114 = vst [vmem:[#allocation2 + $0x8] sm:$0xff] %v110
    %v115 = vld [vmem:[%s2] sm:$0xf]
    %v116 = vld [vmem:[%s2 + $0x4] sm:$0xf]
    %v117 = vld [vmem:[%s2 + $0x8] sm:$0xf]
    %v118 = vld [vmem:[%s2 + $0xc] sm:$0xf]
    %v123 = vunpack.c.l.b16 %v115
    %v124 = vunpack.c.l.b16 %v116
    %v125 = vunpack.c.l.b16 %v117
    %v126 = vunpack.c.l.b16 %v118
    %v127 = vpack.c.b16 %v124, %v123
    %v128 = vpack.c.b16 %v126, %v125
    %131 = vmatprep.subr.bf16.mxu0 0
    %132 = vmatpush1.bf16.msra.mxu0 0
    %133 = vmatprep.subr.bf16.mxu0 0
    %134 = vmatpush1.bf16.msra.mxu0 0
    %135 = vmatprep.subr.bf16.mxu0 0
    %136 = vmatpush1.bf16.msra.mxu0 0
    %137 = vmatprep.subr.bf16.mxu0 0
    %138 = vmatpush1.bf16.msra.mxu0 0
    %139 = vmatprep.subr.bf16.mxu0 0
    %140 = vmatpush1.bf16.msra.mxu0 0
    %141 = vmatprep.subr.bf16.mxu0 0
    %142 = vmatpush1.bf16.msra.mxu0 0
    %143 = vmatprep.subr.bf16.mxu0 0
    %144 = vmatpush1.bf16.msra.mxu0 %v128
    %145 = vmatprep.subr.bf16.mxu0 0
    %146 = vmatpush1.bf16.msra.mxu0 %v127
    %147 = vmatprep.subr.bf16.mxu0 0
    %148 = vmatpush2.bf16.msra.mxu0 0
    %149 = vmatprep.subr.bf16.mxu0 0
    %150 = vmatpush2.bf16.msra.mxu0 0
    %151 = vmatprep.subr.bf16.mxu0 0
    %152 = vmatpush2.bf16.msra.mxu0 0
    %153 = vmatprep.subr.bf16.mxu0 0
    %154 = vmatpush2.bf16.msra.mxu0 0
    %155 = vmatprep.subr.bf16.mxu0 0
    %156 = vmatpush2.bf16.msra.mxu0 0
    %157 = vmatprep.subr.bf16.mxu0 0
    %158 = vmatpush2.bf16.msra.mxu0 0
    %159 = vmatprep.subr.bf16.mxu0 0
    %160 = vmatpush2.bf16.msra.mxu0 0
    %161 = vmatprep.subr.bf16.mxu0 0
    %162 = vmatpush2.bf16.msra.mxu0 0
    %163 = vmatprep.mubr.bf16.mxu0 0
    %164 = vmatmul.mubr.bf16.gmra.mxu0 %v70
    %v165 = vpop.f32.mrf.mxu0
    %v166 = vadd.f32 0.0, %v165
    %v167 = vpop.f32.mrf.mxu0
    %v168 = vpop.f32.mrf.mxu0
    %v169 = vadd.f32 0.0, %v168
    %v170 = vpop.f32.mrf.mxu0
    %171 = vdwg.mxu0
    %172 = vst [vmem:[#allocation3] sm:$0xff] %v166
    %173 = vst [vmem:[#allocation3 + $0x8] sm:$0xff] %v169
    %v174 = vld [vmem:[%s3] sm:$0xf]
    %v175 = vld [vmem:[%s3 + $0x4] sm:$0xf]
    %v176 = vld [vmem:[%s3 + $0x8] sm:$0xf]
    %v177 = vld [vmem:[%s3 + $0xc] sm:$0xf]
    %v182 = vunpack.c.l.b16 %v174
    %v183 = vunpack.c.l.b16 %v175
    %v184 = vunpack.c.l.b16 %v176
    %v185 = vunpack.c.l.b16 %v177
    %v186 = vpack.c.b16 %v183, %v182
    %v187 = vpack.c.b16 %v185, %v184
    %190 = vmatprep.subr.bf16.mxu0 0
    %191 = vmatpush1.bf16.msra.mxu0 0
    %192 = vmatprep.subr.bf16.mxu0 0
    %193 = vmatpush1.bf16.msra.mxu0 0
    %194 = vmatprep.subr.bf16.mxu0 0
    %195 = vmatpush1.bf16.msra.mxu0 0
    %196 = vmatprep.subr.bf16.mxu0 0
    %197 = vmatpush1.bf16.msra.mxu0 0
    %198 = vmatprep.subr.bf16.mxu0 0
    %199 = vmatpush1.bf16.msra.mxu0 0
    %200 = vmatprep.subr.bf16.mxu0 0
    %201 = vmatpush1.bf16.msra.mxu0 0
    %202 = vmatprep.subr.bf16.mxu0 0
    %203 = vmatpush1.bf16.msra.mxu0 %v187
    %204 = vmatprep.subr.bf16.mxu0 0
    %205 = vmatpush1.bf16.msra.mxu0 %v186
    %206 = vmatprep.subr.bf16.mxu0 0
    %207 = vmatpush2.bf16.msra.mxu0 0
    %208 = vmatprep.subr.bf16.mxu0 0
    %209 = vmatpush2.bf16.msra.mxu0 0
    %210 = vmatprep.subr.bf16.mxu0 0
    %211 = vmatpush2.bf16.msra.mxu0 0
    %212 = vmatprep.subr.bf16.mxu0 0
    %213 = vmatpush2.bf16.msra.mxu0 0
    %214 = vmatprep.subr.bf16.mxu0 0
    %215 = vmatpush2.bf16.msra.mxu0 0
    %216 = vmatprep.subr.bf16.mxu0 0
    %217 = vmatpush2.bf16.msra.mxu0 0
    %218 = vmatprep.subr.bf16.mxu0 0
    %219 = vmatpush2.bf16.msra.mxu0 0
    %220 = vmatprep.subr.bf16.mxu0 0
    %221 = vmatpush2.bf16.msra.mxu0 0
    %222 = vmatprep.mubr.bf16.mxu0 0
    %223 = vmatmul.mubr.bf16.gmra.mxu0 %v70
    %v224 = vpop.f32.mrf.mxu0
    %v225 = vadd.f32 0.0, %v224
    %v226 = vpop.f32.mrf.mxu0
    %v227 = vpop.f32.mrf.mxu0
    %v228 = vadd.f32 0.0, %v227
    %v229 = vpop.f32.mrf.mxu0
    %230 = vdwg.mxu0
    %231 = vst [vmem:[#allocation4] sm:$0xff] %v225
    %232 = vst [vmem:[#allocation4 + $0x8] sm:$0xff] %v228
    %v233 = vld [vmem:[#allocation2] sm:$0xff]
    %v234 = vld [vmem:[#allocation2 + $0x8] sm:$0xff]
    %v235 = vpack.c.bf16 %v233, %v233
    %v236 = vpack.c.bf16 %v234, %v234
    %v237 = vld [vmem:[#allocation3] sm:$0xff]
    %v238 = vld [vmem:[#allocation3 + $0x8] sm:$0xff]
    %v239 = vpack.c.bf16 %v237, %v237
    %v240 = vpack.c.bf16 %v238, %v238
    %v241 = vld [vmem:[#allocation4] sm:$0xff]
    %v242 = vld [vmem:[#allocation4 + $0x8] sm:$0xff]
    %v243 = vpack.c.bf16 %v241, %v241
    %v244 = vpack.c.bf16 %v242, %v242
    %v246 = vsel %vm68, %v235, 0
    %v249 = vsel %vm68, %v239, 0
    %251 = vmatprep.subr.bf16.mxu0 0
    %252 = vmatpush1.bf16.xpose.msra.mxu0 0
    %253 = vmatprep.subr.bf16.mxu0 0
    %254 = vmatpush1.bf16.xpose.msra.mxu0 0
    %255 = vmatprep.subr.bf16.mxu0 0
    %256 = vmatpush1.bf16.xpose.msra.mxu0 0
    %257 = vmatprep.subr.bf16.mxu0 0
    %258 = vmatpush1.bf16.xpose.msra.mxu0 0
    %259 = vmatprep.subr.bf16.mxu0 0
    %260 = vmatpush1.bf16.xpose.msra.mxu0 0
    %261 = vmatprep.subr.bf16.mxu0 0
    %262 = vmatpush1.bf16.xpose.msra.mxu0 0
    %263 = vmatprep.subr.bf16.mxu0 0
    %264 = vmatpush1.bf16.xpose.msra.mxu0 0
    %265 = vmatprep.subr.bf16.mxu0 0
    %266 = vmatpush1.bf16.xpose.msra.mxu0 %v249
    %267 = vmatprep.subr.bf16.mxu0 0
    %268 = vmatpush2.bf16.xpose.msra.mxu0 0
    %269 = vmatprep.subr.bf16.mxu0 0
    %270 = vmatpush2.bf16.xpose.msra.mxu0 0
    %271 = vmatprep.subr.bf16.mxu0 0
    %272 = vmatpush2.bf16.xpose.msra.mxu0 0
    %273 = vmatprep.subr.bf16.mxu0 0
    %274 = vmatpush2.bf16.xpose.msra.mxu0 0
    %275 = vmatprep.subr.bf16.mxu0 0
    %276 = vmatpush2.bf16.xpose.msra.mxu0 0
    %277 = vmatprep.subr.bf16.mxu0 0
    %278 = vmatpush2.bf16.xpose.msra.mxu0 0
    %279 = vmatprep.subr.bf16.mxu0 0
    %280 = vmatpush2.bf16.xpose.msra.mxu0 0
    %281 = vmatprep.subr.bf16.mxu0 0
    %282 = vmatpush2.bf16.xpose.msra.mxu0 0
    %283 = vmatprep.mubr.bf16.mxu0 0
    %284 = vmatmul.mubr.bf16.gmra.mxu0 %v246
    %v285 = vpop.f32.mrf.mxu0
    %v286 = vadd.f32 0.0, %v285
    %v287 = vpop.f32.mrf.mxu0
    %v288 = vpop.f32.mrf.mxu0
    %v289 = vpop.f32.mrf.mxu0
    %290 = vdwg.mxu0
    %v292 = vsel %vm68, %v236, 0
    %v295 = vsel %vm68, %v240, 0
    %297 = vmatprep.subr.bf16.mxu0 0
    %298 = vmatpush1.bf16.xpose.msra.mxu0 0
    %299 = vmatprep.subr.bf16.mxu0 0
    %300 = vmatpush1.bf16.xpose.msra.mxu0 0
    %301 = vmatprep.subr.bf16.mxu0 0
    %302 = vmatpush1.bf16.xpose.msra.mxu0 0
    %303 = vmatprep.subr.bf16.mxu0 0
    %304 = vmatpush1.bf16.xpose.msra.mxu0 0
    %305 = vmatprep.subr.bf16.mxu0 0
    %306 = vmatpush1.bf16.xpose.msra.mxu0 0
    %307 = vmatprep.subr.bf16.mxu0 0
    %308 = vmatpush1.bf16.xpose.msra.mxu0 0
    %309 = vmatprep.subr.bf16.mxu0 0
    %310 = vmatpush1.bf16.xpose.msra.mxu0 0
    %311 = vmatprep.subr.bf16.mxu0 0
    %312 = vmatpush1.bf16.xpose.msra.mxu0 %v295
    %313 = vmatprep.subr.bf16.mxu0 0
    %314 = vmatpush2.bf16.xpose.msra.mxu0 0
    %315 = vmatprep.subr.bf16.mxu0 0
    %316 = vmatpush2.bf16.xpose.msra.mxu0 0
    %317 = vmatprep.subr.bf16.mxu0 0
    %318 = vmatpush2.bf16.xpose.msra.mxu0 0
    %319 = vmatprep.subr.bf16.mxu0 0
    %320 = vmatpush2.bf16.xpose.msra.mxu0 0
    %321 = vmatprep.subr.bf16.mxu0 0
    %322 = vmatpush2.bf16.xpose.msra.mxu0 0
    %323 = vmatprep.subr.bf16.mxu0 0
    %324 = vmatpush2.bf16.xpose.msra.mxu0 0
    %325 = vmatprep.subr.bf16.mxu0 0
    %326 = vmatpush2.bf16.xpose.msra.mxu0 0
    %327 = vmatprep.subr.bf16.mxu0 0
    %328 = vmatpush2.bf16.xpose.msra.mxu0 0
    %329 = vmatprep.mubr.bf16.mxu0 0
    %330 = vmatmul.mubr.bf16.gmra.mxu0 %v292
    %v331 = vpop.f32.mrf.mxu0
    %v332 = vadd.f32 0.0, %v331
    %v333 = vpop.f32.mrf.mxu0
    %v334 = vpop.f32.mrf.mxu0
    %v335 = vpop.f32.mrf.mxu0
    %336 = vdwg.mxu0
    %v337 = vmul.f32 %v286, 0.17677669
    %v338 = vmul.f32 %v332, 0.17677669
    %vm339 = vcmask 64512
    %v340 = vsel %vm339, %v337, -inf
    %341 = vmax.xlane.f32.xlu0 %v340
    %v342 = vpop.xlane.xlu0 %341
    %v343 = vsel %vm339, %v338, -inf
    %344 = vmax.xlane.f32.xlu0 %v343
    %v345 = vpop.xlane.xlu0 %344
    %v346 = vsub.f32 %v337, %v342
    %v347 = vsub.f32 %v338, %v345
    %v348 = vmul.f32 %v346, 1.442695
    %v349 = vpow.pop %v348
    %v350 = vmul.f32 %v347, 1.442695
    %v351 = vpow.pop %v350
    %v352 = vsel %vm339, %v349, 0.0
    %353 = vadd.xlane.f32.xlu0 %v352
    %v354 = vpop.xlane.xlu0 %353
    %v355 = vsel %vm339, %v351, 0.0
    %356 = vadd.xlane.f32.xlu0 %v355
    %v357 = vpop.xlane.xlu0 %356
    %v358 = vrcp.pop %v354
    %v359 = vrcp.pop %v357
    %v360 = vmul.f32 %v349, %v358
    %v361 = vmul.f32 %v351, %v359
    %v362 = vpack.c.bf16 %v360, %v360
    %v363 = vpack.c.bf16 %v361, %v361
    %v365 = vsel %vm339, %v362, 0
    %vm367 = vcmask 1043456
    %v369 = vsel %vm367, %v243, 0
    %371 = vmatprep.subr.bf16.mxu0 0
    %372 = vmatpush1.bf16.msra.mxu0 0
    %373 = vmatprep.subr.bf16.mxu0 0
    %374 = vmatpush1.bf16.msra.mxu0 0
    %375 = vmatprep.subr.bf16.mxu0 0
    %376 = vmatpush1.bf16.msra.mxu0 0
    %377 = vmatprep.subr.bf16.mxu0 0
    %378 = vmatpush1.bf16.msra.mxu0 0
    %379 = vmatprep.subr.bf16.mxu0 0
    %380 = vmatpush1.bf16.msra.mxu0 0
    %381 = vmatprep.subr.bf16.mxu0 0
    %382 = vmatpush1.bf16.msra.mxu0 0
    %383 = vmatprep.subr.bf16.mxu0 0
    %384 = vmatpush1.bf16.msra.mxu0 0
    %385 = vmatprep.subr.bf16.mxu0 0
    %386 = vmatpush1.bf16.msra.mxu0 %v369
    %387 = vmatprep.subr.bf16.mxu0 0
    %388 = vmatpush2.bf16.msra.mxu0 0
    %389 = vmatprep.subr.bf16.mxu0 0
    %390 = vmatpush2.bf16.msra.mxu0 0
    %391 = vmatprep.subr.bf16.mxu0 0
    %392 = vmatpush2.bf16.msra.mxu0 0
    %393 = vmatprep.subr.bf16.mxu0 0
    %394 = vmatpush2.bf16.msra.mxu0 0
    %395 = vmatprep.subr.bf16.mxu0 0
    %396 = vmatpush2.bf16.msra.mxu0 0
    %397 = vmatprep.subr.bf16.mxu0 0
    %398 = vmatpush2.bf16.msra.mxu0 0
    %399 = vmatprep.subr.bf16.mxu0 0
    %400 = vmatpush2.bf16.msra.mxu0 0
    %401 = vmatprep.subr.bf16.mxu0 0
    %402 = vmatpush2.bf16.msra.mxu0 0
    %403 = vmatprep.mubr.bf16.mxu0 0
    %404 = vmatmul.mubr.bf16.gmra.mxu0 %v365
    %v405 = vpop.f32.mrf.mxu0
    %v406 = vadd.f32 0.0, %v405
    %v407 = vpop.f32.mrf.mxu0
    %v408 = vpop.f32.mrf.mxu0
    %v409 = vpop.f32.mrf.mxu0
    %410 = vdwg.mxu0
    %v412 = vsel %vm339, %v363, 0
    %v415 = vsel %vm367, %v244, 0
    %417 = vmatprep.subr.bf16.mxu0 0
    %418 = vmatpush1.bf16.msra.mxu0 0
    %419 = vmatprep.subr.bf16.mxu0 0
    %420 = vmatpush1.bf16.msra.mxu0 0
    %421 = vmatprep.subr.bf16.mxu0 0
    %422 = vmatpush1.bf16.msra.mxu0 0
    %423 = vmatprep.subr.bf16.mxu0 0
    %424 = vmatpush1.bf16.msra.mxu0 0
    %425 = vmatprep.subr.bf16.mxu0 0
    %426 = vmatpush1.bf16.msra.mxu0 0
    %427 = vmatprep.subr.bf16.mxu0 0
    %428 = vmatpush1.bf16.msra.mxu0 0
    %429 = vmatprep.subr.bf16.mxu0 0
    %430 = vmatpush1.bf16.msra.mxu0 0
    %431 = vmatprep.subr.bf16.mxu0 0
    %432 = vmatpush1.bf16.msra.mxu0 %v415
    %433 = vmatprep.subr.bf16.mxu0 0
    %434 = vmatpush2.bf16.msra.mxu0 0
    %435 = vmatprep.subr.bf16.mxu0 0
    %436 = vmatpush2.bf16.msra.mxu0 0
    %437 = vmatprep.subr.bf16.mxu0 0
    %438 = vmatpush2.bf16.msra.mxu0 0
    %439 = vmatprep.subr.bf16.mxu0 0
    %440 = vmatpush2.bf16.msra.mxu0 0
    %441 = vmatprep.subr.bf16.mxu0 0
    %442 = vmatpush2.bf16.msra.mxu0 0
    %443 = vmatprep.subr.bf16.mxu0 0
    %444 = vmatpush2.bf16.msra.mxu0 0
    %445 = vmatprep.subr.bf16.mxu0 0
    %446 = vmatpush2.bf16.msra.mxu0 0
    %447 = vmatprep.subr.bf16.mxu0 0
    %448 = vmatpush2.bf16.msra.mxu0 0
    %449 = vmatprep.mubr.bf16.mxu0 0
    %450 = vmatmul.mubr.bf16.gmra.mxu0 %v412
    %v451 = vpop.f32.mrf.mxu0
    %v452 = vadd.f32 0.0, %v451
    %v453 = vpop.f32.mrf.mxu0
    %v454 = vpop.f32.mrf.mxu0
    %v455 = vpop.f32.mrf.mxu0
    %456 = vdwg.mxu0
    %457 = vst.msk [vmem:[#allocation5] sm:$0xff] %vm68, %v406
    %458 = vst.msk [vmem:[#allocation5 + $0x8] sm:$0xff] %vm68, %v452
    %v459 = vld [vmem:[#allocation2] sm:$0xff]
    %v460 = vld [vmem:[#allocation2 + $0x8] sm:$0xff]
    %v461 = vpack.c.bf16 %v459, %v459
    %v462 = vpack.c.bf16 %v460, %v460
    %v463 = vld [vmem:[#allocation3] sm:$0xff]
    %v464 = vld [vmem:[#allocation3 + $0x8] sm:$0xff]
    %v465 = vpack.c.bf16 %v463, %v463
    %v466 = vpack.c.bf16 %v464, %v464
    %v467 = vld [vmem:[#allocation4] sm:$0xff]
    %v468 = vld [vmem:[#allocation4 + $0x8] sm:$0xff]
    %v469 = vpack.c.bf16 %v467, %v467
    %v470 = vpack.c.bf16 %v468, %v468
    %472 = vrot.lane.b32.xlu0 %v461, 96
    %v473 = vpop.permute.xlu0 %472
    %475 = vrot.lane.b32.xlu0 %v465, 96
    %v476 = vpop.permute.xlu0 %475
    %v478 = vsel %vm68, %v473, 0
    %v481 = vsel %vm68, %v476, 0
    %483 = vmatprep.subr.bf16.mxu0 0
    %484 = vmatpush1.bf16.xpose.msra.mxu0 0
    %485 = vmatprep.subr.bf16.mxu0 0
    %486 = vmatpush1.bf16.xpose.msra.mxu0 0
    %487 = vmatprep.subr.bf16.mxu0 0
    %488 = vmatpush1.bf16.xpose.msra.mxu0 0
    %489 = vmatprep.subr.bf16.mxu0 0
    %490 = vmatpush1.bf16.xpose.msra.mxu0 0
    %491 = vmatprep.subr.bf16.mxu0 0
    %492 = vmatpush1.bf16.xpose.msra.mxu0 0
    %493 = vmatprep.subr.bf16.mxu0 0
    %494 = vmatpush1.bf16.xpose.msra.mxu0 0
    %495 = vmatprep.subr.bf16.mxu0 0
    %496 = vmatpush1.bf16.xpose.msra.mxu0 0
    %497 = vmatprep.subr.bf16.mxu0 0
    %498 = vmatpush1.bf16.xpose.msra.mxu0 %v481
    %499 = vmatprep.subr.bf16.mxu0 0
    %500 = vmatpush2.bf16.xpose.msra.mxu0 0
    %501 = vmatprep.subr.bf16.mxu0 0
    %502 = vmatpush2.bf16.xpose.msra.mxu0 0
    %503 = vmatprep.subr.bf16.mxu0 0
    %504 = vmatpush2.bf16.xpose.msra.mxu0 0
    %505 = vmatprep.subr.bf16.mxu0 0
    %506 = vmatpush2.bf16.xpose.msra.mxu0 0
    %507 = vmatprep.subr.bf16.mxu0 0
    %508 = vmatpush2.bf16.xpose.msra.mxu0 0
    %509 = vmatprep.subr.bf16.mxu0 0
    %510 = vmatpush2.bf16.xpose.msra.mxu0 0
    %511 = vmatprep.subr.bf16.mxu0 0
    %512 = vmatpush2.bf16.xpose.msra.mxu0 0
    %513 = vmatprep.subr.bf16.mxu0 0
    %514 = vmatpush2.bf16.xpose.msra.mxu0 0
    %515 = vmatprep.mubr.bf16.mxu0 0
    %516 = vmatmul.mubr.bf16.gmra.mxu0 %v478
    %v517 = vpop.f32.mrf.mxu0
    %v518 = vadd.f32 0.0, %v517
    %v519 = vpop.f32.mrf.mxu0
    %v520 = vpop.f32.mrf.mxu0
    %v521 = vpop.f32.mrf.mxu0
    %522 = vdwg.mxu0
    %524 = vrot.lane.b32.xlu0 %v462, 96
    %v525 = vpop.permute.xlu0 %524
    %527 = vrot.lane.b32.xlu0 %v466, 96
    %v528 = vpop.permute.xlu0 %527
    %v530 = vsel %vm68, %v525, 0
    %v533 = vsel %vm68, %v528, 0
    %535 = vmatprep.subr.bf16.mxu0 0
    %536 = vmatpush1.bf16.xpose.msra.mxu0 0
    %537 = vmatprep.subr.bf16.mxu0 0
    %538 = vmatpush1.bf16.xpose.msra.mxu0 0
    %539 = vmatprep.subr.bf16.mxu0 0
    %540 = vmatpush1.bf16.xpose.msra.mxu0 0
    %541 = vmatprep.subr.bf16.mxu0 0
    %542 = vmatpush1.bf16.xpose.msra.mxu0 0
    %543 = vmatprep.subr.bf16.mxu0 0
    %544 = vmatpush1.bf16.xpose.msra.mxu0 0
    %545 = vmatprep.subr.bf16.mxu0 0
    %546 = vmatpush1.bf16.xpose.msra.mxu0 0
    %547 = vmatprep.subr.bf16.mxu0 0
    %548 = vmatpush1.bf16.xpose.msra.mxu0 0
    %549 = vmatprep.subr.bf16.mxu0 0
    %550 = vmatpush1.bf16.xpose.msra.mxu0 %v533
    %551 = vmatprep.subr.bf16.mxu0 0
    %552 = vmatpush2.bf16.xpose.msra.mxu0 0
    %553 = vmatprep.subr.bf16.mxu0 0
    %554 = vmatpush2.bf16.xpose.msra.mxu0 0
    %555 = vmatprep.subr.bf16.mxu0 0
    %556 = vmatpush2.bf16.xpose.msra.mxu0 0
    %557 = vmatprep.subr.bf16.mxu0 0
    %558 = vmatpush2.bf16.xpose.msra.mxu0 0
    %559 = vmatprep.subr.bf16.mxu0 0
    %560 = vmatpush2.bf16.xpose.msra.mxu0 0
    %561 = vmatprep.subr.bf16.mxu0 0
    %562 = vmatpush2.bf16.xpose.msra.mxu0 0
    %563 = vmatprep.subr.bf16.mxu0 0
    %564 = vmatpush2.bf16.xpose.msra.mxu0 0
    %565 = vmatprep.subr.bf16.mxu0 0
    %566 = vmatpush2.bf16.xpose.msra.mxu0 0
    %567 = vmatprep.mubr.bf16.mxu0 0
    %568 = vmatmul.mubr.bf16.gmra.mxu0 %v530
    %v569 = vpop.f32.mrf.mxu0
    %v570 = vadd.f32 0.0, %v569
    %v571 = vpop.f32.mrf.mxu0
    %v572 = vpop.f32.mrf.mxu0
    %v573 = vpop.f32.mrf.mxu0
    %574 = vdwg.mxu0
    %v575 = vmul.f32 %v518, 0.17677669
    %v576 = vmul.f32 %v570, 0.17677669
    %v577 = vsel %vm339, %v575, -inf
    %578 = vmax.xlane.f32.xlu0 %v577
    %v579 = vpop.xlane.xlu0 %578
    %v580 = vsel %vm339, %v576, -inf
    %581 = vmax.xlane.f32.xlu0 %v580
    %v582 = vpop.xlane.xlu0 %581
    %v583 = vsub.f32 %v575, %v579
    %v584 = vsub.f32 %v576, %v582
    %v585 = vmul.f32 %v583, 1.442695
    %v586 = vpow.pop %v585
    %v587 = vmul.f32 %v584, 1.442695
    %v588 = vpow.pop %v587
    %v589 = vsel %vm339, %v586, 0.0
    %590 = vadd.xlane.f32.xlu0 %v589
    %v591 = vpop.xlane.xlu0 %590
    %v592 = vsel %vm339, %v588, 0.0
    %593 = vadd.xlane.f32.xlu0 %v592
    %v594 = vpop.xlane.xlu0 %593
    %v595 = vrcp.pop %v591
    %v596 = vrcp.pop %v594
    %v597 = vmul.f32 %v586, %v595
    %v598 = vmul.f32 %v588, %v596
    %v599 = vpack.c.bf16 %v597, %v597
    %v600 = vpack.c.bf16 %v598, %v598
    %602 = vrot.lane.b32.xlu0 %v469, 96
    %v603 = vpop.permute.xlu0 %602
    %v605 = vsel %vm339, %v599, 0
    %v608 = vsel %vm367, %v603, 0
    %610 = vmatprep.subr.bf16.mxu0 0
    %611 = vmatpush1.bf16.msra.mxu0 0
    %612 = vmatprep.subr.bf16.mxu0 0
    %613 = vmatpush1.bf16.msra.mxu0 0
    %614 = vmatprep.subr.bf16.mxu0 0
    %615 = vmatpush1.bf16.msra.mxu0 0
    %616 = vmatprep.subr.bf16.mxu0 0
    %617 = vmatpush1.bf16.msra.mxu0 0
    %618 = vmatprep.subr.bf16.mxu0 0
    %619 = vmatpush1.bf16.msra.mxu0 0
    %620 = vmatprep.subr.bf16.mxu0 0
    %621 = vmatpush1.bf16.msra.mxu0 0
    %622 = vmatprep.subr.bf16.mxu0 0
    %623 = vmatpush1.bf16.msra.mxu0 0
    %624 = vmatprep.subr.bf16.mxu0 0
    %625 = vmatpush1.bf16.msra.mxu0 %v608
    %626 = vmatprep.subr.bf16.mxu0 0
    %627 = vmatpush2.bf16.msra.mxu0 0
    %628 = vmatprep.subr.bf16.mxu0 0
    %629 = vmatpush2.bf16.msra.mxu0 0
    %630 = vmatprep.subr.bf16.mxu0 0
    %631 = vmatpush2.bf16.msra.mxu0 0
    %632 = vmatprep.subr.bf16.mxu0 0
    %633 = vmatpush2.bf16.msra.mxu0 0
    %634 = vmatprep.subr.bf16.mxu0 0
    %635 = vmatpush2.bf16.msra.mxu0 0
    %636 = vmatprep.subr.bf16.mxu0 0
    %637 = vmatpush2.bf16.msra.mxu0 0
    %638 = vmatprep.subr.bf16.mxu0 0
    %639 = vmatpush2.bf16.msra.mxu0 0
    %640 = vmatprep.subr.bf16.mxu0 0
    %641 = vmatpush2.bf16.msra.mxu0 0
    %642 = vmatprep.mubr.bf16.mxu0 0
    %643 = vmatmul.mubr.bf16.gmra.mxu0 %v605
    %v644 = vpop.f32.mrf.mxu0
    %v645 = vadd.f32 0.0, %v644
    %v646 = vpop.f32.mrf.mxu0
    %v647 = vpop.f32.mrf.mxu0
    %v648 = vpop.f32.mrf.mxu0
    %649 = vdwg.mxu0
    %651 = vrot.lane.b32.xlu0 %v470, 96
    %v652 = vpop.permute.xlu0 %651
    %v654 = vsel %vm339, %v600, 0
    %v657 = vsel %vm367, %v652, 0
    %659 = vmatprep.subr.bf16.mxu0 0
    %660 = vmatpush1.bf16.msra.mxu0 0
    %661 = vmatprep.subr.bf16.mxu0 0
    %662 = vmatpush1.bf16.msra.mxu0 0
    %663 = vmatprep.subr.bf16.mxu0 0
    %664 = vmatpush1.bf16.msra.mxu0 0
    %665 = vmatprep.subr.bf16.mxu0 0
    %666 = vmatpush1.bf16.msra.mxu0 0
    %667 = vmatprep.subr.bf16.mxu0 0
    %668 = vmatpush1.bf16.msra.mxu0 0
    %669 = vmatprep.subr.bf16.mxu0 0
    %670 = vmatpush1.bf16.msra.mxu0 0
    %671 = vmatprep.subr.bf16.mxu0 0
    %672 = vmatpush1.bf16.msra.mxu0 0
    %673 = vmatprep.subr.bf16.mxu0 0
    %674 = vmatpush1.bf16.msra.mxu0 %v657
    %675 = vmatprep.subr.bf16.mxu0 0
    %676 = vmatpush2.bf16.msra.mxu0 0
    %677 = vmatprep.subr.bf16.mxu0 0
    %678 = vmatpush2.bf16.msra.mxu0 0
    %679 = vmatprep.subr.bf16.mxu0 0
    %680 = vmatpush2.bf16.msra.mxu0 0
    %681 = vmatprep.subr.bf16.mxu0 0
    %682 = vmatpush2.bf16.msra.mxu0 0
    %683 = vmatprep.subr.bf16.mxu0 0
    %684 = vmatpush2.bf16.msra.mxu0 0
    %685 = vmatprep.subr.bf16.mxu0 0
    %686 = vmatpush2.bf16.msra.mxu0 0
    %687 = vmatprep.subr.bf16.mxu0 0
    %688 = vmatpush2.bf16.msra.mxu0 0
    %689 = vmatprep.subr.bf16.mxu0 0
    %690 = vmatpush2.bf16.msra.mxu0 0
    %691 = vmatprep.mubr.bf16.mxu0 0
    %692 = vmatmul.mubr.bf16.gmra.mxu0 %v654
    %v693 = vpop.f32.mrf.mxu0
    %v694 = vadd.f32 0.0, %v693
    %v695 = vpop.f32.mrf.mxu0
    %v696 = vpop.f32.mrf.mxu0
    %v697 = vpop.f32.mrf.mxu0
    %698 = vdwg.mxu0
    %701 = vrot.lane.b32.xlu0 %v645, 32
    %v702 = vpop.permute.xlu0 %701
    %703 = vrot.lane.b32.xlu0 %v694, 32
    %v704 = vpop.permute.xlu0 %703
    %vm707 = vcmask 523520
    %708 = vst.msk [vmem:[#allocation5] sm:$0xff] %vm707, %v702
    %709 = vst.msk [vmem:[#allocation5 + $0x8] sm:$0xff] %vm707, %v704
    %v710 = vld [vmem:[#allocation2] sm:$0xff]
    %v711 = vld [vmem:[#allocation2 + $0x8] sm:$0xff]
    %v712 = vpack.c.bf16 %v710, %v710
    %v713 = vpack.c.bf16 %v711, %v711
    %v714 = vld [vmem:[#allocation3] sm:$0xff]
    %v715 = vld [vmem:[#allocation3 + $0x8] sm:$0xff]
    %v716 = vpack.c.bf16 %v714, %v714
    %v717 = vpack.c.bf16 %v715, %v715
    %v718 = vld [vmem:[#allocation4] sm:$0xff]
    %v719 = vld [vmem:[#allocation4 + $0x8] sm:$0xff]
    %v720 = vpack.c.bf16 %v718, %v718
    %v721 = vpack.c.bf16 %v719, %v719
    %723 = vrot.lane.b32.xlu0 %v712, 64
    %v724 = vpop.permute.xlu0 %723
    %726 = vrot.lane.b32.xlu0 %v716, 64
    %v727 = vpop.permute.xlu0 %726
    %v729 = vsel %vm68, %v724, 0
    %v732 = vsel %vm68, %v727, 0
    %734 = vmatprep.subr.bf16.mxu0 0
    %735 = vmatpush1.bf16.xpose.msra.mxu0 0
    %736 = vmatprep.subr.bf16.mxu0 0
    %737 = vmatpush1.bf16.xpose.msra.mxu0 0
    %738 = vmatprep.subr.bf16.mxu0 0
    %739 = vmatpush1.bf16.xpose.msra.mxu0 0
    %740 = vmatprep.subr.bf16.mxu0 0
    %741 = vmatpush1.bf16.xpose.msra.mxu0 0
    %742 = vmatprep.subr.bf16.mxu0 0
    %743 = vmatpush1.bf16.xpose.msra.mxu0 0
    %744 = vmatprep.subr.bf16.mxu0 0
    %745 = vmatpush1.bf16.xpose.msra.mxu0 0
    %746 = vmatprep.subr.bf16.mxu0 0
    %747 = vmatpush1.bf16.xpose.msra.mxu0 0
    %748 = vmatprep.subr.bf16.mxu0 0
    %749 = vmatpush1.bf16.xpose.msra.mxu0 %v732
    %750 = vmatprep.subr.bf16.mxu0 0
    %751 = vmatpush2.bf16.xpose.msra.mxu0 0
    %752 = vmatprep.subr.bf16.mxu0 0
    %753 = vmatpush2.bf16.xpose.msra.mxu0 0
    %754 = vmatprep.subr.bf16.mxu0 0
    %755 = vmatpush2.bf16.xpose.msra.mxu0 0
    %756 = vmatprep.subr.bf16.mxu0 0
    %757 = vmatpush2.bf16.xpose.msra.mxu0 0
    %758 = vmatprep.subr.bf16.mxu0 0
    %759 = vmatpush2.bf16.xpose.msra.mxu0 0
    %760 = vmatprep.subr.bf16.mxu0 0
    %761 = vmatpush2.bf16.xpose.msra.mxu0 0
    %762 = vmatprep.subr.bf16.mxu0 0
    %763 = vmatpush2.bf16.xpose.msra.mxu0 0
    %764 = vmatprep.subr.bf16.mxu0 0
    %765 = vmatpush2.bf16.xpose.msra.mxu0 0
    %766 = vmatprep.mubr.bf16.mxu0 0
    %767 = vmatmul.mubr.bf16.gmra.mxu0 %v729
    %v768 = vpop.f32.mrf.mxu0
    %v769 = vadd.f32 0.0, %v768
    %v770 = vpop.f32.mrf.mxu0
    %v771 = vpop.f32.mrf.mxu0
    %v772 = vpop.f32.mrf.mxu0
    %773 = vdwg.mxu0
    %775 = vrot.lane.b32.xlu0 %v713, 64
    %v776 = vpop.permute.xlu0 %775
    %778 = vrot.lane.b32.xlu0 %v717, 64
    %v779 = vpop.permute.xlu0 %778
    %v781 = vsel %vm68, %v776, 0
    %v784 = vsel %vm68, %v779, 0
    %786 = vmatprep.subr.bf16.mxu0 0
    %787 = vmatpush1.bf16.xpose.msra.mxu0 0
    %788 = vmatprep.subr.bf16.mxu0 0
    %789 = vmatpush1.bf16.xpose.msra.mxu0 0
    %790 = vmatprep.subr.bf16.mxu0 0
    %791 = vmatpush1.bf16.xpose.msra.mxu0 0
    %792 = vmatprep.subr.bf16.mxu0 0
    %793 = vmatpush1.bf16.xpose.msra.mxu0 0
    %794 = vmatprep.subr.bf16.mxu0 0
    %795 = vmatpush1.bf16.xpose.msra.mxu0 0
    %796 = vmatprep.subr.bf16.mxu0 0
    %797 = vmatpush1.bf16.xpose.msra.mxu0 0
    %798 = vmatprep.subr.bf16.mxu0 0
    %799 = vmatpush1.bf16.xpose.msra.mxu0 0
    %800 = vmatprep.subr.bf16.mxu0 0
    %801 = vmatpush1.bf16.xpose.msra.mxu0 %v784
    %802 = vmatprep.subr.bf16.mxu0 0
    %803 = vmatpush2.bf16.xpose.msra.mxu0 0
    %804 = vmatprep.subr.bf16.mxu0 0
    %805 = vmatpush2.bf16.xpose.msra.mxu0 0
    %806 = vmatprep.subr.bf16.mxu0 0
    %807 = vmatpush2.bf16.xpose.msra.mxu0 0
    %808 = vmatprep.subr.bf16.mxu0 0
    %809 = vmatpush2.bf16.xpose.msra.mxu0 0
    %810 = vmatprep.subr.bf16.mxu0 0
    %811 = vmatpush2.bf16.xpose.msra.mxu0 0
    %812 = vmatprep.subr.bf16.mxu0 0
    %813 = vmatpush2.bf16.xpose.msra.mxu0 0
    %814 = vmatprep.subr.bf16.mxu0 0
    %815 = vmatpush2.bf16.xpose.msra.mxu0 0
    %816 = vmatprep.subr.bf16.mxu0 0
    %817 = vmatpush2.bf16.xpose.msra.mxu0 0
    %818 = vmatprep.mubr.bf16.mxu0 0
    %819 = vmatmul.mubr.bf16.gmra.mxu0 %v781
    %v820 = vpop.f32.mrf.mxu0
    %v821 = vadd.f32 0.0, %v820
    %v822 = vpop.f32.mrf.mxu0
    %v823 = vpop.f32.mrf.mxu0
    %v824 = vpop.f32.mrf.mxu0
    %825 = vdwg.mxu0
    %v826 = vmul.f32 %v769, 0.17677669
    %v827 = vmul.f32 %v821, 0.17677669
    %v828 = vsel %vm339, %v826, -inf
    %829 = vmax.xlane.f32.xlu0 %v828
    %v830 = vpop.xlane.xlu0 %829
    %v831 = vsel %vm339, %v827, -inf
    %832 = vmax.xlane.f32.xlu0 %v831
    %v833 = vpop.xlane.xlu0 %832
    %v834 = vsub.f32 %v826, %v830
    %v835 = vsub.f32 %v827, %v833
    %v836 = vmul.f32 %v834, 1.442695
    %v837 = vpow.pop %v836
    %v838 = vmul.f32 %v835, 1.442695
    %v839 = vpow.pop %v838
    %v840 = vsel %vm339, %v837, 0.0
    %841 = vadd.xlane.f32.xlu0 %v840
    %v842 = vpop.xlane.xlu0 %841
    %v843 = vsel %vm339, %v839, 0.0
    %844 = vadd.xlane.f32.xlu0 %v843
    %v845 = vpop.xlane.xlu0 %844
    %v846 = vrcp.pop %v842
    %v847 = vrcp.pop %v845
    %v848 = vmul.f32 %v837, %v846
    %v849 = vmul.f32 %v839, %v847
    %v850 = vpack.c.bf16 %v848, %v848
    %v851 = vpack.c.bf16 %v849, %v849
    %853 = vrot.lane.b32.xlu0 %v720, 64
    %v854 = vpop.permute.xlu0 %853
    %v856 = vsel %vm339, %v850, 0
    %v859 = vsel %vm367, %v854, 0
    %861 = vmatprep.subr.bf16.mxu0 0
    %862 = vmatpush1.bf16.msra.mxu0 0
    %863 = vmatprep.subr.bf16.mxu0 0
    %864 = vmatpush1.bf16.msra.mxu0 0
    %865 = vmatprep.subr.bf16.mxu0 0
    %866 = vmatpush1.bf16.msra.mxu0 0
    %867 = vmatprep.subr.bf16.mxu0 0
    %868 = vmatpush1.bf16.msra.mxu0 0
    %869 = vmatprep.subr.bf16.mxu0 0
    %870 = vmatpush1.bf16.msra.mxu0 0
    %871 = vmatprep.subr.bf16.mxu0 0
    %872 = vmatpush1.bf16.msra.mxu0 0
    %873 = vmatprep.subr.bf16.mxu0 0
    %874 = vmatpush1.bf16.msra.mxu0 0
    %875 = vmatprep.subr.bf16.mxu0 0
    %876 = vmatpush1.bf16.msra.mxu0 %v859
    %877 = vmatprep.subr.bf16.mxu0 0
    %878 = vmatpush2.bf16.msra.mxu0 0
    %879 = vmatprep.subr.bf16.mxu0 0
    %880 = vmatpush2.bf16.msra.mxu0 0
    %881 = vmatprep.subr.bf16.mxu0 0
    %882 = vmatpush2.bf16.msra.mxu0 0
    %883 = vmatprep.subr.bf16.mxu0 0
    %884 = vmatpush2.bf16.msra.mxu0 0
    %885 = vmatprep.subr.bf16.mxu0 0
    %886 = vmatpush2.bf16.msra.mxu0 0
    %887 = vmatprep.subr.bf16.mxu0 0
    %888 = vmatpush2.bf16.msra.mxu0 0
    %889 = vmatprep.subr.bf16.mxu0 0
    %890 = vmatpush2.bf16.msra.mxu0 0
    %891 = vmatprep.subr.bf16.mxu0 0
    %892 = vmatpush2.bf16.msra.mxu0 0
    %893 = vmatprep.mubr.bf16.mxu0 0
    %894 = vmatmul.mubr.bf16.gmra.mxu0 %v856
    %v895 = vpop.f32.mrf.mxu0
    %v896 = vadd.f32 0.0, %v895
    %v897 = vpop.f32.mrf.mxu0
    %v898 = vpop.f32.mrf.mxu0
    %v899 = vpop.f32.mrf.mxu0
    %900 = vdwg.mxu0
    %902 = vrot.lane.b32.xlu0 %v721, 64
    %v903 = vpop.permute.xlu0 %902
    %v905 = vsel %vm339, %v851, 0
    %v908 = vsel %vm367, %v903, 0
    %910 = vmatprep.subr.bf16.mxu0 0
    %911 = vmatpush1.bf16.msra.mxu0 0
    %912 = vmatprep.subr.bf16.mxu0 0
    %913 = vmatpush1.bf16.msra.mxu0 0
    %914 = vmatprep.subr.bf16.mxu0 0
    %915 = vmatpush1.bf16.msra.mxu0 0
    %916 = vmatprep.subr.bf16.mxu0 0
    %917 = vmatpush1.bf16.msra.mxu0 0
    %918 = vmatprep.subr.bf16.mxu0 0
    %919 = vmatpush1.bf16.msra.mxu0 0
    %920 = vmatprep.subr.bf16.mxu0 0
    %921 = vmatpush1.bf16.msra.mxu0 0
    %922 = vmatprep.subr.bf16.mxu0 0
    %923 = vmatpush1.bf16.msra.mxu0 0
    %924 = vmatprep.subr.bf16.mxu0 0
    %925 = vmatpush1.bf16.msra.mxu0 %v908
    %926 = vmatprep.subr.bf16.mxu0 0
    %927 = vmatpush2.bf16.msra.mxu0 0
    %928 = vmatprep.subr.bf16.mxu0 0
    %929 = vmatpush2.bf16.msra.mxu0 0
    %930 = vmatprep.subr.bf16.mxu0 0
    %931 = vmatpush2.bf16.msra.mxu0 0
    %932 = vmatprep.subr.bf16.mxu0 0
    %933 = vmatpush2.bf16.msra.mxu0 0
    %934 = vmatprep.subr.bf16.mxu0 0
    %935 = vmatpush2.bf16.msra.mxu0 0
    %936 = vmatprep.subr.bf16.mxu0 0
    %937 = vmatpush2.bf16.msra.mxu0 0
    %938 = vmatprep.subr.bf16.mxu0 0
    %939 = vmatpush2.bf16.msra.mxu0 0
    %940 = vmatprep.subr.bf16.mxu0 0
    %941 = vmatpush2.bf16.msra.mxu0 0
    %942 = vmatprep.mubr.bf16.mxu0 0
    %943 = vmatmul.mubr.bf16.gmra.mxu0 %v905
    %v944 = vpop.f32.mrf.mxu0
    %v945 = vadd.f32 0.0, %v944
    %v946 = vpop.f32.mrf.mxu0
    %v947 = vpop.f32.mrf.mxu0
    %v948 = vpop.f32.mrf.mxu0
    %949 = vdwg.mxu0
    %952 = vrot.lane.b32.xlu0 %v896, 64
    %v953 = vpop.permute.xlu0 %952
    %954 = vrot.lane.b32.xlu0 %v945, 64
    %v955 = vpop.permute.xlu0 %954
    %vm958 = vcmask 785920
    %959 = vst.msk [vmem:[#allocation5] sm:$0xff] %vm958, %v953
    %960 = vst.msk [vmem:[#allocation5 + $0x8] sm:$0xff] %vm958, %v955
    %v961 = vld [vmem:[#allocation2] sm:$0xff]
    %v962 = vld [vmem:[#allocation2 + $0x8] sm:$0xff]
    %v963 = vpack.c.bf16 %v961, %v961
    %v964 = vpack.c.bf16 %v962, %v962
    %v965 = vld [vmem:[#allocation3] sm:$0xff]
    %v966 = vld [vmem:[#allocation3 + $0x8] sm:$0xff]
    %v967 = vpack.c.bf16 %v965, %v965
    %v968 = vpack.c.bf16 %v966, %v966
    %v969 = vld [vmem:[#allocation4] sm:$0xff]
    %v970 = vld [vmem:[#allocation4 + $0x8] sm:$0xff]
    %v971 = vpack.c.bf16 %v969, %v969
    %v972 = vpack.c.bf16 %v970, %v970
    %974 = vrot.lane.b32.xlu0 %v963, 32
    %v975 = vpop.permute.xlu0 %974
    %977 = vrot.lane.b32.xlu0 %v967, 32
    %v978 = vpop.permute.xlu0 %977
    %v980 = vsel %vm68, %v975, 0
    %v983 = vsel %vm68, %v978, 0
    %985 = vmatprep.subr.bf16.mxu0 0
    %986 = vmatpush1.bf16.xpose.msra.mxu0 0
    %987 = vmatprep.subr.bf16.mxu0 0
    %988 = vmatpush1.bf16.xpose.msra.mxu0 0
    %989 = vmatprep.subr.bf16.mxu0 0
    %990 = vmatpush1.bf16.xpose.msra.mxu0 0
    %991 = vmatprep.subr.bf16.mxu0 0
    %992 = vmatpush1.bf16.xpose.msra.mxu0 0
    %993 = vmatprep.subr.bf16.mxu0 0
    %994 = vmatpush1.bf16.xpose.msra.mxu0 0
    %995 = vmatprep.subr.bf16.mxu0 0
    %996 = vmatpush1.bf16.xpose.msra.mxu0 0
    %997 = vmatprep.subr.bf16.mxu0 0
    %998 = vmatpush1.bf16.xpose.msra.mxu0 0
    %999 = vmatprep.subr.bf16.mxu0 0
    %1000 = vmatpush1.bf16.xpose.msra.mxu0 %v983
    %1001 = vmatprep.subr.bf16.mxu0 0
    %1002 = vmatpush2.bf16.xpose.msra.mxu0 0
    %1003 = vmatprep.subr.bf16.mxu0 0
    %1004 = vmatpush2.bf16.xpose.msra.mxu0 0
    %1005 = vmatprep.subr.bf16.mxu0 0
    %1006 = vmatpush2.bf16.xpose.msra.mxu0 0
    %1007 = vmatprep.subr.bf16.mxu0 0
    %1008 = vmatpush2.bf16.xpose.msra.mxu0 0
    %1009 = vmatprep.subr.bf16.mxu0 0
    %1010 = vmatpush2.bf16.xpose.msra.mxu0 0
    %1011 = vmatprep.subr.bf16.mxu0 0
    %1012 = vmatpush2.bf16.xpose.msra.mxu0 0
    %1013 = vmatprep.subr.bf16.mxu0 0
    %1014 = vmatpush2.bf16.xpose.msra.mxu0 0
    %1015 = vmatprep.subr.bf16.mxu0 0
    %1016 = vmatpush2.bf16.xpose.msra.mxu0 0
    %1017 = vmatprep.mubr.bf16.mxu0 0
    %1018 = vmatmul.mubr.bf16.gmra.mxu0 %v980
    %v1019 = vpop.f32.mrf.mxu0
    %v1020 = vadd.f32 0.0, %v1019
    %v1021 = vpop.f32.mrf.mxu0
    %v1022 = vpop.f32.mrf.mxu0
    %v1023 = vpop.f32.mrf.mxu0
    %1024 = vdwg.mxu0
    %1026 = vrot.lane.b32.xlu0 %v964, 32
    %v1027 = vpop.permute.xlu0 %1026
    %1029 = vrot.lane.b32.xlu0 %v968, 32
    %v1030 = vpop.permute.xlu0 %1029
    %v1032 = vsel %vm68, %v1027, 0
    %v1035 = vsel %vm68, %v1030, 0
    %1037 = vmatprep.subr.bf16.mxu0 0
    %1038 = vmatpush1.bf16.xpose.msra.mxu0 0
    %1039 = vmatprep.subr.bf16.mxu0 0
    %1040 = vmatpush1.bf16.xpose.msra.mxu0 0
    %1041 = vmatprep.subr.bf16.mxu0 0
    %1042 = vmatpush1.bf16.xpose.msra.mxu0 0
    %1043 = vmatprep.subr.bf16.mxu0 0
    %1044 = vmatpush1.bf16.xpose.msra.mxu0 0
    %1045 = vmatprep.subr.bf16.mxu0 0
    %1046 = vmatpush1.bf16.xpose.msra.mxu0 0
    %1047 = vmatprep.subr.bf16.mxu0 0
    %1048 = vmatpush1.bf16.xpose.msra.mxu0 0
    %1049 = vmatprep.subr.bf16.mxu0 0
    %1050 = vmatpush1.bf16.xpose.msra.mxu0 0
    %1051 = vmatprep.subr.bf16.mxu0 0
    %1052 = vmatpush1.bf16.xpose.msra.mxu0 %v1035
    %1053 = vmatprep.subr.bf16.mxu0 0
    %1054 = vmatpush2.bf16.xpose.msra.mxu0 0
    %1055 = vmatprep.subr.bf16.mxu0 0
    %1056 = vmatpush2.bf16.xpose.msra.mxu0 0
    %1057 = vmatprep.subr.bf16.mxu0 0
    %1058 = vmatpush2.bf16.xpose.msra.mxu0 0
    %1059 = vmatprep.subr.bf16.mxu0 0
    %1060 = vmatpush2.bf16.xpose.msra.mxu0 0
    %1061 = vmatprep.subr.bf16.mxu0 0
    %1062 = vmatpush2.bf16.xpose.msra.mxu0 0
    %1063 = vmatprep.subr.bf16.mxu0 0
    %1064 = vmatpush2.bf16.xpose.msra.mxu0 0
    %1065 = vmatprep.subr.bf16.mxu0 0
    %1066 = vmatpush2.bf16.xpose.msra.mxu0 0
    %1067 = vmatprep.subr.bf16.mxu0 0
    %1068 = vmatpush2.bf16.xpose.msra.mxu0 0
    %1069 = vmatprep.mubr.bf16.mxu0 0
    %1070 = vmatmul.mubr.bf16.gmra.mxu0 %v1032
    %v1071 = vpop.f32.mrf.mxu0
    %v1072 = vadd.f32 0.0, %v1071
    %v1073 = vpop.f32.mrf.mxu0
    %v1074 = vpop.f32.mrf.mxu0
    %v1075 = vpop.f32.mrf.mxu0
    %1076 = vdwg.mxu0
    %v1077 = vmul.f32 %v1020, 0.17677669
    %v1078 = vmul.f32 %v1072, 0.17677669
    %v1079 = vsel %vm339, %v1077, -inf
    %1080 = vmax.xlane.f32.xlu0 %v1079
    %v1081 = vpop.xlane.xlu0 %1080
    %v1082 = vsel %vm339, %v1078, -inf
    %1083 = vmax.xlane.f32.xlu0 %v1082
    %v1084 = vpop.xlane.xlu0 %1083
    %v1085 = vsub.f32 %v1077, %v1081
    %v1086 = vsub.f32 %v1078, %v1084
    %v1087 = vmul.f32 %v1085, 1.442695
    %v1088 = vpow.pop %v1087
    %v1089 = vmul.f32 %v1086, 1.442695
    %v1090 = vpow.pop %v1089
    %v1091 = vsel %vm339, %v1088, 0.0
    %1092 = vadd.xlane.f32.xlu0 %v1091
    %v1093 = vpop.xlane.xlu0 %1092
    %v1094 = vsel %vm339, %v1090, 0.0
    %1095 = vadd.xlane.f32.xlu0 %v1094
    %v1096 = vpop.xlane.xlu0 %1095
    %v1097 = vrcp.pop %v1093
    %v1098 = vrcp.pop %v1096
    %v1099 = vmul.f32 %v1088, %v1097
    %v1100 = vmul.f32 %v1090, %v1098
    %v1101 = vpack.c.bf16 %v1099, %v1099
    %v1102 = vpack.c.bf16 %v1100, %v1100
    %1104 = vrot.lane.b32.xlu0 %v971, 32
    %v1105 = vpop.permute.xlu0 %1104
    %v1107 = vsel %vm339, %v1101, 0
    %v1110 = vsel %vm367, %v1105, 0
    %1112 = vmatprep.subr.bf16.mxu0 0
    %1113 = vmatpush1.bf16.msra.mxu0 0
    %1114 = vmatprep.subr.bf16.mxu0 0
    %1115 = vmatpush1.bf16.msra.mxu0 0
    %1116 = vmatprep.subr.bf16.mxu0 0
    %1117 = vmatpush1.bf16.msra.mxu0 0
    %1118 = vmatprep.subr.bf16.mxu0 0
    %1119 = vmatpush1.bf16.msra.mxu0 0
    %1120 = vmatprep.subr.bf16.mxu0 0
    %1121 = vmatpush1.bf16.msra.mxu0 0
    %1122 = vmatprep.subr.bf16.mxu0 0
    %1123 = vmatpush1.bf16.msra.mxu0 0
    %1124 = vmatprep.subr.bf16.mxu0 0
    %1125 = vmatpush1.bf16.msra.mxu0 0
    %1126 = vmatprep.subr.bf16.mxu0 0
    %1127 = vmatpush1.bf16.msra.mxu0 %v1110
    %1128 = vmatprep.subr.bf16.mxu0 0
    %1129 = vmatpush2.bf16.msra.mxu0 0
    %1130 = vmatprep.subr.bf16.mxu0 0
    %1131 = vmatpush2.bf16.msra.mxu0 0
    %1132 = vmatprep.subr.bf16.mxu0 0
    %1133 = vmatpush2.bf16.msra.mxu0 0
    %1134 = vmatprep.subr.bf16.mxu0 0
    %1135 = vmatpush2.bf16.msra.mxu0 0
    %1136 = vmatprep.subr.bf16.mxu0 0
    %1137 = vmatpush2.bf16.msra.mxu0 0
    %1138 = vmatprep.subr.bf16.mxu0 0
    %1139 = vmatpush2.bf16.msra.mxu0 0
    %1140 = vmatprep.subr.bf16.mxu0 0
    %1141 = vmatpush2.bf16.msra.mxu0 0
    %1142 = vmatprep.subr.bf16.mxu0 0
    %1143 = vmatpush2.bf16.msra.mxu0 0
    %1144 = vmatprep.mubr.bf16.mxu0 0
    %1145 = vmatmul.mubr.bf16.gmra.mxu0 %v1107
    %v1146 = vpop.f32.mrf.mxu0
    %v1147 = vadd.f32 0.0, %v1146
    %v1148 = vpop.f32.mrf.mxu0
    %v1149 = vpop.f32.mrf.mxu0
    %v1150 = vpop.f32.mrf.mxu0
    %1151 = vdwg.mxu0
    %1153 = vrot.lane.b32.xlu0 %v972, 32
    %v1154 = vpop.permute.xlu0 %1153
    %v1156 = vsel %vm339, %v1102, 0
    %v1159 = vsel %vm367, %v1154, 0
    %1161 = vmatprep.subr.bf16.mxu0 0
    %1162 = vmatpush1.bf16.msra.mxu0 0
    %1163 = vmatprep.subr.bf16.mxu0 0
    %1164 = vmatpush1.bf16.msra.mxu0 0
    %1165 = vmatprep.subr.bf16.mxu0 0
    %1166 = vmatpush1.bf16.msra.mxu0 0
    %1167 = vmatprep.subr.bf16.mxu0 0
    %1168 = vmatpush1.bf16.msra.mxu0 0
    %1169 = vmatprep.subr.bf16.mxu0 0
    %1170 = vmatpush1.bf16.msra.mxu0 0
    %1171 = vmatprep.subr.bf16.mxu0 0
    %1172 = vmatpush1.bf16.msra.mxu0 0
    %1173 = vmatprep.subr.bf16.mxu0 0
    %1174 = vmatpush1.bf16.msra.mxu0 0
    %1175 = vmatprep.subr.bf16.mxu0 0
    %1176 = vmatpush1.bf16.msra.mxu0 %v1159
    %1177 = vmatprep.subr.bf16.mxu0 0
    %1178 = vmatpush2.bf16.msra.mxu0 0
    %1179 = vmatprep.subr.bf16.mxu0 0
    %1180 = vmatpush2.bf16.msra.mxu0 0
    %1181 = vmatprep.subr.bf16.mxu0 0
    %1182 = vmatpush2.bf16.msra.mxu0 0
    %1183 = vmatprep.subr.bf16.mxu0 0
    %1184 = vmatpush2.bf16.msra.mxu0 0
    %1185 = vmatprep.subr.bf16.mxu0 0
    %1186 = vmatpush2.bf16.msra.mxu0 0
    %1187 = vmatprep.subr.bf16.mxu0 0
    %1188 = vmatpush2.bf16.msra.mxu0 0
    %1189 = vmatprep.subr.bf16.mxu0 0
    %1190 = vmatpush2.bf16.msra.mxu0 0
    %1191 = vmatprep.subr.bf16.mxu0 0
    %1192 = vmatpush2.bf16.msra.mxu0 0
    %1193 = vmatprep.mubr.bf16.mxu0 0
    %1194 = vmatmul.mubr.bf16.gmra.mxu0 %v1156
    %v1195 = vpop.f32.mrf.mxu0
    %v1196 = vadd.f32 0.0, %v1195
    %v1197 = vpop.f32.mrf.mxu0
    %v1198 = vpop.f32.mrf.mxu0
    %v1199 = vpop.f32.mrf.mxu0
    %1200 = vdwg.mxu0
    %1203 = vrot.lane.b32.xlu0 %v1147, 96
    %v1204 = vpop.permute.xlu0 %1203
    %1205 = vrot.lane.b32.xlu0 %v1196, 96
    %v1206 = vpop.permute.xlu0 %1205
    %vm1209 = vcmask 1048320
    %1210 = vst.msk [vmem:[#allocation5] sm:$0xff] %vm1209, %v1204
    %1211 = vst.msk [vmem:[#allocation5 + $0x8] sm:$0xff] %vm1209, %v1206
    %v1212 = vld [vmem:[#allocation5] sm:$0xff]
    %v1213 = vld [vmem:[#allocation5 + $0x8] sm:$0xff]
    %v1214 = vpack.c.bf16 %v1213, %v1212
    %v1215 = vld [vmem:[%s4] sm:$0xf]
    %v1216 = vld [vmem:[%s4 + $0x4] sm:$0xf]
    %v1217 = vld [vmem:[%s4 + $0x8] sm:$0xf]
    %v1218 = vld [vmem:[%s4 + $0xc] sm:$0xf]
    %v1219 = vld [vmem:[%s4 + $0x10] sm:$0xf]
    %v1220 = vld [vmem:[%s4 + $0x14] sm:$0xf]
    %v1221 = vld [vmem:[%s4 + $0x18] sm:$0xf]
    %v1222 = vld [vmem:[%s4 + $0x1c] sm:$0xf]
    %v1223 = vld [vmem:[%s4 + $0x20] sm:$0xf]
    %v1224 = vld [vmem:[%s4 + $0x24] sm:$0xf]
    %v1225 = vld [vmem:[%s4 + $0x28] sm:$0xf]
    %v1226 = vld [vmem:[%s4 + $0x2c] sm:$0xf]
    %v1227 = vld [vmem:[%s4 + $0x30] sm:$0xf]
    %v1228 = vld [vmem:[%s4 + $0x34] sm:$0xf]
    %v1229 = vld [vmem:[%s4 + $0x38] sm:$0xf]
    %v1230 = vld [vmem:[%s4 + $0x3c] sm:$0xf]
    %v1231 = vld [vmem:[%s5] sm:$0x1]
    %v1233 = vlaneseq
    %v1234 = vshrl.u32 %v1233, 7
    %v1235 = vsub.s32 0, %v1234
    %v1236 = vrot.slane %v1231, %v1235
    %v1254 = vunpack.c.l.b16 %v1215
    %v1255 = vunpack.c.l.b16 %v1216
    %v1256 = vunpack.c.l.b16 %v1217
    %v1257 = vunpack.c.l.b16 %v1218
    %v1258 = vunpack.c.l.b16 %v1219
    %v1259 = vunpack.c.l.b16 %v1220
    %v1260 = vunpack.c.l.b16 %v1221
    %v1261 = vunpack.c.l.b16 %v1222
    %v1262 = vunpack.c.l.b16 %v1223
    %v1263 = vunpack.c.l.b16 %v1224
    %v1264 = vunpack.c.l.b16 %v1225
    %v1265 = vunpack.c.l.b16 %v1226
    %v1266 = vunpack.c.l.b16 %v1227
    %v1267 = vunpack.c.l.b16 %v1228
    %v1268 = vunpack.c.l.b16 %v1229
    %v1269 = vunpack.c.l.b16 %v1230
    %v1270 = vpack.c.b16 %v1255, %v1254
    %v1271 = vpack.c.b16 %v1257, %v1256
    %v1272 = vpack.c.b16 %v1259, %v1258
    %v1273 = vpack.c.b16 %v1261, %v1260
    %v1274 = vpack.c.b16 %v1263, %v1262
    %v1275 = vpack.c.b16 %v1265, %v1264
    %v1276 = vpack.c.b16 %v1267, %v1266
    %v1277 = vpack.c.b16 %v1269, %v1268
    %1286 = vmatprep.subr.bf16.mxu0 0
    %1287 = vmatpush1.bf16.msra.mxu0 %v1277
    %1288 = vmatprep.subr.bf16.mxu0 0
    %1289 = vmatpush1.bf16.msra.mxu0 %v1276
    %1290 = vmatprep.subr.bf16.mxu0 0
    %1291 = vmatpush1.bf16.msra.mxu0 %v1275
    %1292 = vmatprep.subr.bf16.mxu0 0
    %1293 = vmatpush1.bf16.msra.mxu0 %v1274
    %1294 = vmatprep.subr.bf16.mxu0 0
    %1295 = vmatpush1.bf16.msra.mxu0 %v1273
    %1296 = vmatprep.subr.bf16.mxu0 0
    %1297 = vmatpush1.bf16.msra.mxu0 %v1272
    %1298 = vmatprep.subr.bf16.mxu0 0
    %1299 = vmatpush1.bf16.msra.mxu0 %v1271
    %1300 = vmatprep.subr.bf16.mxu0 0
    %1301 = vmatpush1.bf16.msra.mxu0 %v1270
    %1302 = vmatprep.subr.bf16.mxu0 0
    %1303 = vmatpush2.bf16.msra.mxu0 0
    %1304 = vmatprep.subr.bf16.mxu0 0
    %1305 = vmatpush2.bf16.msra.mxu0 0
    %1306 = vmatprep.subr.bf16.mxu0 0
    %1307 = vmatpush2.bf16.msra.mxu0 0
    %1308 = vmatprep.subr.bf16.mxu0 0
    %1309 = vmatpush2.bf16.msra.mxu0 0
    %1310 = vmatprep.subr.bf16.mxu0 0
    %1311 = vmatpush2.bf16.msra.mxu0 0
    %1312 = vmatprep.subr.bf16.mxu0 0
    %1313 = vmatpush2.bf16.msra.mxu0 0
    %1314 = vmatprep.subr.bf16.mxu0 0
    %1315 = vmatpush2.bf16.msra.mxu0 0
    %1316 = vmatprep.subr.bf16.mxu0 0
    %1317 = vmatpush2.bf16.msra.mxu0 0
    %1318 = vmatprep.mubr.bf16.mxu0 0
    %1319 = vmatmul.mubr.bf16.gmra.mxu0 %v1214
    %v1320 = vpop.f32.mrf.mxu0
    %v1321 = vadd.f32 %v1236, %v1320
    %v1322 = vpop.f32.mrf.mxu0
    %v1323 = vpop.f32.mrf.mxu0
    %v1324 = vadd.f32 %v1236, %v1323
    %v1325 = vpop.f32.mrf.mxu0
    %1326 = vdwg.mxu0
    %v1327 = vadd.f32 %v1321, %v49
    %v1328 = vadd.f32 %v1324, %v50
    %v1329 = vld [vmem:[%s6] sm:$0x1]
    %v1330 = vld [vmem:[%s7] sm:$0x1]
    %v1331 = vsel %vm68, %v1327, 0.0
    %1332 = vadd.xlane.f32.xlu0 %v1331
    %v1333 = vpop.xlane.xlu0 %1332
    %v1334 = vsel %vm68, %v1328, 0.0
    %1335 = vadd.xlane.f32.xlu0 %v1334
    %v1336 = vpop.xlane.xlu0 %1335
    %v1337 = vrcp.pop 32.0
    %v1338 = vmul.f32 %v1333, %v1337
    %v1339 = vmul.f32 %v1336, %v1337
    %v1340 = vsub.f32 %v1327, %v1338
    %v1341 = vsub.f32 %v1328, %v1339
    %v1342 = vmul.f32 %v1340, %v1340
    %v1343 = vmul.f32 %v1341, %v1341
    %v1344 = vsel %vm68, %v1342, 0.0
    %1345 = vadd.xlane.f32.xlu0 %v1344
    %v1346 = vpop.xlane.xlu0 %1345
    %v1347 = vsel %vm68, %v1343, 0.0
    %1348 = vadd.xlane.f32.xlu0 %v1347
    %v1349 = vpop.xlane.xlu0 %1348
    %v1350 = vmul.f32 %v1346, %v1337
    %v1351 = vmul.f32 %v1349, %v1337
    %v1352 = vadd.f32 %v1350, 1e-05
    %v1353 = vadd.f32 %v1351, 1e-05
    %v1354 = vrsqrt.pop %v1352
    %v1355 = vrsqrt.pop %v1353
    %v1356 = vmul.f32 %v1340, %v1354
    %v1357 = vmul.f32 %v1341, %v1355
    %v1359 = vlaneseq
    %v1360 = vshrl.u32 %v1359, 7
    %v1361 = vsub.s32 0, %v1360
    %v1362 = vrot.slane %v1329, %v1361
    %v1364 = vmul.f32 %v1356, %v1362
    %v1365 = vmul.f32 %v1357, %v1362
    %v1367 = vlaneseq
    %v1368 = vshrl.u32 %v1367, 7
    %v1369 = vsub.s32 0, %v1368
    %v1370 = vrot.slane %v1330, %v1369
    %v1372 = vadd.f32 %v1364, %v1370
    %v1373 = vadd.f32 %v1365, %v1370
    %v1374 = vpack.c.bf16 %v1373, %v1372
    %v1375 = vld [vmem:[%s8] sm:$0xf]
    %v1376 = vld [vmem:[%s8 + $0x4] sm:$0xf]
    %v1377 = vld [vmem:[%s8 + $0x8] sm:$0xf]
    %v1378 = vld [vmem:[%s8 + $0xc] sm:$0xf]
    %v1379 = vld [vmem:[%s9] sm:$0x1]
    %v1381 = vlaneseq
    %v1382 = vshrl.u32 %v1381, 7
    %v1383 = vsub.s32 0, %v1382
    %v1384 = vrot.slane %v1379, %v1383
    %v1390 = vunpack.c.l.b16 %v1375
    %v1391 = vunpack.c.l.b16 %v1376
    %v1392 = vunpack.c.l.b16 %v1377
    %v1393 = vunpack.c.l.b16 %v1378
    %v1394 = vpack.c.b16 %v1391, %v1390
    %v1395 = vpack.c.b16 %v1393, %v1392
    %v1399 = vsel %vm68, %v1374, 0
    %1401 = vmatprep.subr.bf16.mxu0 0
    %1402 = vmatpush1.bf16.msra.mxu0 0
    %1403 = vmatprep.subr.bf16.mxu0 0
    %1404 = vmatpush1.bf16.msra.mxu0 0
    %1405 = vmatprep.subr.bf16.mxu0 0
    %1406 = vmatpush1.bf16.msra.mxu0 0
    %1407 = vmatprep.subr.bf16.mxu0 0
    %1408 = vmatpush1.bf16.msra.mxu0 0
    %1409 = vmatprep.subr.bf16.mxu0 0
    %1410 = vmatpush1.bf16.msra.mxu0 0
    %1411 = vmatprep.subr.bf16.mxu0 0
    %1412 = vmatpush1.bf16.msra.mxu0 0
    %1413 = vmatprep.subr.bf16.mxu0 0
    %1414 = vmatpush1.bf16.msra.mxu0 %v1395
    %1415 = vmatprep.subr.bf16.mxu0 0
    %1416 = vmatpush1.bf16.msra.mxu0 %v1394
    %1417 = vmatprep.subr.bf16.mxu0 0
    %1418 = vmatpush2.bf16.msra.mxu0 0
    %1419 = vmatprep.subr.bf16.mxu0 0
    %1420 = vmatpush2.bf16.msra.mxu0 0
    %1421 = vmatprep.subr.bf16.mxu0 0
    %1422 = vmatpush2.bf16.msra.mxu0 0
    %1423 = vmatprep.subr.bf16.mxu0 0
    %1424 = vmatpush2.bf16.msra.mxu0 0
    %1425 = vmatprep.subr.bf16.mxu0 0
    %1426 = vmatpush2.bf16.msra.mxu0 0
    %1427 = vmatprep.subr.bf16.mxu0 0
    %1428 = vmatpush2.bf16.msra.mxu0 0
    %1429 = vmatprep.subr.bf16.mxu0 0
    %1430 = vmatpush2.bf16.msra.mxu0 0
    %1431 = vmatprep.subr.bf16.mxu0 0
    %1432 = vmatpush2.bf16.msra.mxu0 0
    %1433 = vmatprep.mubr.bf16.mxu0 0
    %1434 = vmatmul.mubr.bf16.gmra.mxu0 %v1399
    %v1435 = vpop.f32.mrf.mxu0
    %v1436 = vadd.f32 %v1384, %v1435
    %v1437 = vpop.f32.mrf.mxu0
    %v1438 = vpop.f32.mrf.mxu0
    %v1439 = vadd.f32 %v1384, %v1438
    %v1440 = vpop.f32.mrf.mxu0
    %1441 = vdwg.mxu0
    %v1442 = vmax.f32 %v1436, 0.0
    %v1443 = vmax.f32 %v1439, 0.0
    %v1444 = vpack.c.bf16 %v1443, %v1442
    %v1445 = vld [vmem:[%s10] sm:$0xf]
    %v1446 = vld [vmem:[%s10 + $0x4] sm:$0xf]
    %v1447 = vld [vmem:[%s10 + $0x8] sm:$0xf]
    %v1448 = vld [vmem:[%s10 + $0xc] sm:$0xf]
    %v1449 = vld [vmem:[%s10 + $0x10] sm:$0xf]
    %v1450 = vld [vmem:[%s10 + $0x14] sm:$0xf]
    %v1451 = vld [vmem:[%s10 + $0x18] sm:$0xf]
    %v1452 = vld [vmem:[%s10 + $0x1c] sm:$0xf]
    %v1453 = vld [vmem:[%s10 + $0x20] sm:$0xf]
    %v1454 = vld [vmem:[%s10 + $0x24] sm:$0xf]
    %v1455 = vld [vmem:[%s10 + $0x28] sm:$0xf]
    %v1456 = vld [vmem:[%s10 + $0x2c] sm:$0xf]
    %v1457 = vld [vmem:[%s10 + $0x30] sm:$0xf]
    %v1458 = vld [vmem:[%s10 + $0x34] sm:$0xf]
    %v1459 = vld [vmem:[%s10 + $0x38] sm:$0xf]
    %v1460 = vld [vmem:[%s10 + $0x3c] sm:$0xf]
    %v1461 = vld [vmem:[%s11] sm:$0x1]
    %v1463 = vlaneseq
    %v1464 = vshrl.u32 %v1463, 7
    %v1465 = vsub.s32 0, %v1464
    %v1466 = vrot.slane %v1461, %v1465
    %v1484 = vunpack.c.l.b16 %v1445
    %v1485 = vunpack.c.l.b16 %v1446
    %v1486 = vunpack.c.l.b16 %v1447
    %v1487 = vunpack.c.l.b16 %v1448
    %v1488 = vunpack.c.l.b16 %v1449
    %v1489 = vunpack.c.l.b16 %v1450
    %v1490 = vunpack.c.l.b16 %v1451
    %v1491 = vunpack.c.l.b16 %v1452
    %v1492 = vunpack.c.l.b16 %v1453
    %v1493 = vunpack.c.l.b16 %v1454
    %v1494 = vunpack.c.l.b16 %v1455
    %v1495 = vunpack.c.l.b16 %v1456
    %v1496 = vunpack.c.l.b16 %v1457
    %v1497 = vunpack.c.l.b16 %v1458
    %v1498 = vunpack.c.l.b16 %v1459
    %v1499 = vunpack.c.l.b16 %v1460
    %v1500 = vpack.c.b16 %v1485, %v1484
    %v1501 = vpack.c.b16 %v1487, %v1486
    %v1502 = vpack.c.b16 %v1489, %v1488
    %v1503 = vpack.c.b16 %v1491, %v1490
    %v1504 = vpack.c.b16 %v1493, %v1492
    %v1505 = vpack.c.b16 %v1495, %v1494
    %v1506 = vpack.c.b16 %v1497, %v1496
    %v1507 = vpack.c.b16 %v1499, %v1498
    %1516 = vmatprep.subr.bf16.mxu0 0
    %1517 = vmatpush1.bf16.msra.mxu0 %v1507
    %1518 = vmatprep.subr.bf16.mxu0 0
    %1519 = vmatpush1.bf16.msra.mxu0 %v1506
    %1520 = vmatprep.subr.bf16.mxu0 0
    %1521 = vmatpush1.bf16.msra.mxu0 %v1505
    %1522 = vmatprep.subr.bf16.mxu0 0
    %1523 = vmatpush1.bf16.msra.mxu0 %v1504
    %1524 = vmatprep.subr.bf16.mxu0 0
    %1525 = vmatpush1.bf16.msra.mxu0 %v1503
    %1526 = vmatprep.subr.bf16.mxu0 0
    %1527 = vmatpush1.bf16.msra.mxu0 %v1502
    %1528 = vmatprep.subr.bf16.mxu0 0
    %1529 = vmatpush1.bf16.msra.mxu0 %v1501
    %1530 = vmatprep.subr.bf16.mxu0 0
    %1531 = vmatpush1.bf16.msra.mxu0 %v1500
    %1532 = vmatprep.subr.bf16.mxu0 0
    %1533 = vmatpush2.bf16.msra.mxu0 0
    %1534 = vmatprep.subr.bf16.mxu0 0
    %1535 = vmatpush2.bf16.msra.mxu0 0
    %1536 = vmatprep.subr.bf16.mxu0 0
    %1537 = vmatpush2.bf16.msra.mxu0 0
    %1538 = vmatprep.subr.bf16.mxu0 0
    %1539 = vmatpush2.bf16.msra.mxu0 0
    %1540 = vmatprep.subr.bf16.mxu0 0
    %1541 = vmatpush2.bf16.msra.mxu0 0
    %1542 = vmatprep.subr.bf16.mxu0 0
    %1543 = vmatpush2.bf16.msra.mxu0 0
    %1544 = vmatprep.subr.bf16.mxu0 0
    %1545 = vmatpush2.bf16.msra.mxu0 0
    %1546 = vmatprep.subr.bf16.mxu0 0
    %1547 = vmatpush2.bf16.msra.mxu0 0
    %1548 = vmatprep.mubr.bf16.mxu0 0
    %1549 = vmatmul.mubr.bf16.gmra.mxu0 %v1444
    %v1550 = vpop.f32.mrf.mxu0
    %v1551 = vadd.f32 %v1466, %v1550
    %v1552 = vpop.f32.mrf.mxu0
    %v1553 = vpop.f32.mrf.mxu0
    %v1554 = vadd.f32 %v1466, %v1553
    %v1555 = vpop.f32.mrf.mxu0
    %1556 = vdwg.mxu0
    %v1557 = vadd.f32 %v1551, %v1372
    %v1558 = vadd.f32 %v1554, %v1373
    %v1559 = vld [vmem:[%s12] sm:$0x1]
    %v1560 = vld [vmem:[%s13] sm:$0x1]
    %v1561 = vsel %vm68, %v1557, 0.0
    %1562 = vadd.xlane.f32.xlu0 %v1561
    %v1563 = vpop.xlane.xlu0 %1562
    %v1564 = vsel %vm68, %v1558, 0.0
    %1565 = vadd.xlane.f32.xlu0 %v1564
    %v1566 = vpop.xlane.xlu0 %1565
    %v1567 = vmul.f32 %v1563, %v1337
    %v1568 = vmul.f32 %v1566, %v1337
    %v1569 = vsub.f32 %v1557, %v1567
    %v1570 = vsub.f32 %v1558, %v1568
    %v1571 = vmul.f32 %v1569, %v1569
    %v1572 = vmul.f32 %v1570, %v1570
    %v1573 = vsel %vm68, %v1571, 0.0
    %1574 = vadd.xlane.f32.xlu0 %v1573
    %v1575 = vpop.xlane.xlu0 %1574
    %v1576 = vsel %vm68, %v1572, 0.0
    %1577 = vadd.xlane.f32.xlu0 %v1576
    %v1578 = vpop.xlane.xlu0 %1577
    %v1579 = vmul.f32 %v1575, %v1337
    %v1580 = vmul.f32 %v1578, %v1337
    %v1581 = vadd.f32 %v1579, 1e-05
    %v1582 = vadd.f32 %v1580, 1e-05
    %v1583 = vrsqrt.pop %v1581
    %v1584 = vrsqrt.pop %v1582
    %v1585 = vmul.f32 %v1569, %v1583
    %v1586 = vmul.f32 %v1570, %v1584
    %v1588 = vlaneseq
    %v1589 = vshrl.u32 %v1588, 7
    %v1590 = vsub.s32 0, %v1589
    %v1591 = vrot.slane %v1559, %v1590
    %v1593 = vmul.f32 %v1585, %v1591
    %v1594 = vmul.f32 %v1586, %v1591
    %v1596 = vlaneseq
    %v1597 = vshrl.u32 %v1596, 7
    %v1598 = vsub.s32 0, %v1597
    %v1599 = vrot.slane %v1560, %v1598
    %v1601 = vadd.f32 %v1593, %v1599
    %v1602 = vadd.f32 %v1594, %v1599
    %1603 = vst.msk [vmem:[#allocation6] sm:$0xff] %vm68, %v1601
    %1604 = vst.msk [vmem:[#allocation6 + $0x8] sm:$0xff] %vm68, %v1602
    // Predicated region
    $region58: #{tpu_custom_call.1} parent=1 // pred_check
      _
    $region59: #{tpu_custom_call.1} parent=1 // pred_check_branch
      %1606 = sbr.rel (0) target = $region61
    $region60: #{tpu_custom_call.1} parent=1 // pred_region
      %s1608 = ssub.s32 256, 256
      %1609 = vsyncadd [#allocation7], %s1608
      %s1610 = sshll.u32 [#allocation6], 4
      %s1611 = int_to_ptr.vmem [resolvable:$true] %s1610
      %1616 = dma.vmem_to_hbm [thread:$0]  %s1611, 256, %s14, [#allocation7], 128, 128, 8
    $region61: #{tpu_custom_call.1} parent=1 // pred_fallthru
      _
    // Predicated region
    $region62: #{tpu_custom_call.1} parent=1 // pred_check
      _
    $region63: #{tpu_custom_call.1} parent=1 // pred_check_branch
      %1618 = sbr.rel (0) target = $region65
    $region64: #{tpu_custom_call.1} parent=1 // pred_region
      %1619 = dma.done [#allocation7], 256
    $region65: #{tpu_custom_call.1} parent=1 // pred_fallthru
      _
    %1620 = vsyncpa [#allocation7], 1

</llo_original>
